<compile_context>
chip_gen: v7x
topology: tpu7x:2x2x1
jax: 0.10.0
libtpu: 0.0.40
codegen_flags: <defaults>
</compile_context>

<pallas_src>
import functools

import jax
import jax.numpy as jnp
from jax.experimental import pallas as pl
from jax.experimental.pallas import tpu as pltpu


# ----------------------------------------------------------------------------
# Pallas kernel: whole WIRE forward for one lane-tile of coordinates.
# Activations are feature-major: z is (2*hp, tile_n), batch on lanes.
# ----------------------------------------------------------------------------
def _wire_kernel(x_ref, w0_ref, b0_ref, wh_ref, bh_ref, wf_ref, bf_ref, out_ref,
                 *, num_hidden, hp, omega0_first, omega0_hidden, sigma0):
    f32 = jnp.float32
    s2 = sigma0 * sigma0

    x = x_ref[...].astype(f32)                    # (in_f, tn)
    in_f = x.shape[0]

    # ---------- first (real) layer: K=in_f is tiny -> VPU broadcast FMAs -------
    W0 = w0_ref[...]                              # (2hp, in_f) = [W1^T ; Wo^T]
    b0 = b0_ref[...]                              # (2hp, 1)
    res = W0[:, 0:1] * x[0:1, :] + b0
    for k in range(1, in_f):
        res = res + W0[:, k:k + 1] * x[k:k + 1, :]
    lin = res[:hp, :]
    sy = res[hp:, :]
    arg = lin * lin + sy * sy
    g = jnp.exp(-s2 * arg)
    ph = omega0_first * lin
    z = jnp.concatenate([jnp.cos(ph) * g, jnp.sin(ph) * g], axis=0)   # (2hp, tn)

    # ---------- hidden complex layers: one fused block matmul per layer --------
    for li in range(num_hidden):
        W = wh_ref[li]                            # (4hp, 2hp)
        b = bh_ref[li]                            # (4hp, 1)
        res = jnp.dot(W, z, preferred_element_type=f32) + b
        # res row blocks = [lin_r ; lin_i ; sy_r ; sy_i]
        sq = res * res
        arg = (sq[:hp, :] + sq[hp:2 * hp, :]
               + sq[2 * hp:3 * hp, :] + sq[3 * hp:, :])
        lin_r = res[:hp, :]
        lin_i = res[hp:2 * hp, :]
        # exp(1j*omega*(lin_r + i lin_i)) * exp(-s2*arg)
        #   = exp(-s2*arg - omega*lin_i) * (cos + i sin)(omega*lin_r)
        g = jnp.exp(-s2 * arg - omega0_hidden * lin_i)
        ph = omega0_hidden * lin_r
        z = jnp.concatenate([jnp.cos(ph) * g, jnp.sin(ph) * g], axis=0)

    # ---------- final complex linear, real part only ----------------------------
    Wf = wf_ref[...]                              # (out8, 2hp) = [Wfr^T | -Wfi^T]
    bf = bf_ref[...]                              # (out8, 1)
    out = jnp.dot(Wf, z, preferred_element_type=f32) + bf
    out_ref[...] = out.astype(out_ref.dtype)


# ----------------------------------------------------------------------------
# Host-side parameter packing (done once, outside the kernel)
# ----------------------------------------------------------------------------
def pack_params(flat_params, num_hidden, hidden_half, hp, out_features, out8):
    f32 = jnp.float32
    it = iter(flat_params)
    rp = hp - hidden_half                      # hidden-axis zero padding

    def pw(a, rpad, cpad):
        return jnp.pad(jnp.asarray(a, f32), ((0, rpad), (0, cpad)))

    # first (real) layer: linear (W1, b1) + scale_orth (Wo, bo), stacked rows.
    W1, b1, Wo, bo = (next(it) for _ in range(4))
    W0 = jnp.concatenate([pw(W1.T, rp, 0), pw(Wo.T, rp, 0)], axis=0)   # (2hp, in_f)
    b0 = jnp.concatenate([pw(b1.T, rp, 0), pw(bo.T, rp, 0)], axis=0)   # (2hp, 1)

    # hidden complex layers -> one (4hp, 2hp) real block per layer:
    #   [ Wr^T  -Wi^T ]   -> lin_r
    #   [ Wi^T   Wr^T ]   -> lin_i
    #   [ Wor^T -Woi^T]   -> sy_r
    #   [ Woi^T  Wor^T]   -> sy_i
    wblks, bblks = [], []
    for _ in range(num_hidden):
        Wr, Wi, br, bi, Wor, Woi, bor, boi = (next(it) for _ in range(8))
        rows = [
            jnp.concatenate([pw(Wr.T, rp, rp), pw(-Wi.T, rp, rp)], axis=1),
            jnp.concatenate([pw(Wi.T, rp, rp), pw(Wr.T, rp, rp)], axis=1),
            jnp.concatenate([pw(Wor.T, rp, rp), pw(-Woi.T, rp, rp)], axis=1),
            jnp.concatenate([pw(Woi.T, rp, rp), pw(Wor.T, rp, rp)], axis=1),
        ]
        wblks.append(jnp.concatenate(rows, axis=0))                     # (4hp, 2hp)
        bblks.append(jnp.concatenate(
            [pw(br.T, rp, 0), pw(bi.T, rp, 0), pw(bor.T, rp, 0), pw(boi.T, rp, 0)],
            axis=0))                                                     # (4hp, 1)
    if num_hidden == 0:
        Wh = jnp.zeros((1, 4 * hp, 2 * hp), f32)
        bh = jnp.zeros((1, 4 * hp, 1), f32)
    else:
        Wh = jnp.stack(wblks, axis=0)            # (L, 4hp, 2hp)
        bh = jnp.stack(bblks, axis=0)            # (L, 4hp, 1)

    # final complex linear, real part: out = zr@Wfr - zi@Wfi + bfr
    Wfr, Wfi, bfr = (next(it) for _ in range(3))
    rpo = out8 - out_features
    Wf = jnp.concatenate([pw(Wfr.T, rpo, rp), pw(-Wfi.T, rpo, rp)], axis=1)  # (out8, 2hp)
    bf = pw(bfr.T, rpo, 0)                                                    # (out8, 1)
    return W0, b0, Wh, bh, Wf, bf


# ----------------------------------------------------------------------------
# Wrapper
# ----------------------------------------------------------------------------
def wire_cmplx_forward(coords, flat_params, num_hidden, out_features,
                       *, omega0_first=10.0, omega0_hidden=10.0, sigma0=10.0,
                       tile_n=1024):
    f32 = jnp.float32
    N, in_f = coords.shape

    hidden_half = flat_params[0].shape[1]
    hp = pl.cdiv(hidden_half, 8) * 8             # sublane-aligned hidden width
    out8 = pl.cdiv(out_features, 8) * 8          # sublane-aligned output rows

    # Feature-major layout: batch lives on the 128-lane axis.
    N_pad = pl.cdiv(N, 128) * 128
    coords_t = jnp.pad(jnp.asarray(coords, f32).T, ((0, 0), (0, N_pad - N)))

    # Cap tile_n so per-layer temporaries (~6 live (4hp, tile_n) f32 arrays)
    # stay a few MiB, then pick the largest 128-multiple divisor of N_pad,
    # favouring >=4 grid steps and an even step count (v7x: 2 TensorCores).
    byte_per_col = 6 * (4 * hp) * 4
    tile_n = min(tile_n, max(128, (8 * 1024 * 1024 // byte_per_col) // 128 * 128))
    divs = [d for d in range(128, N_pad + 1, 128)
            if N_pad % d == 0 and d <= max(tile_n, 128)]
    tile_n = max(divs, key=lambda d: (N_pad // d >= 4, (N_pad // d) % 2 == 0, d))
    grid = (N_pad // tile_n,)

    packed = pack_params(flat_params, num_hidden, hidden_half, hp,
                         out_features, out8)

    kernel = functools.partial(
        _wire_kernel,
        num_hidden=num_hidden,
        hp=hp,
        omega0_first=float(omega0_first),
        omega0_hidden=float(omega0_hidden),
        sigma0=float(sigma0),
    )

    # Coordinate tile moves along the lane axis; packed parameters are small
    # full-array blocks with constant index_map (stay resident across steps).
    x_spec = pl.BlockSpec((in_f, tile_n), lambda i: (0, i))
    param_specs = [
        pl.BlockSpec(p.shape, lambda i, nd=p.ndim: (0,) * nd) for p in packed
    ]
    out_spec = pl.BlockSpec((out8, tile_n), lambda i: (0, i))

    # Generation-aware VMEM limit: never request all of v7x's 64 MiB/core.
    try:
        vmem_cap = pltpu.get_tpu_info().vmem_capacity_bytes
    except Exception:
        vmem_cap = 64 * 1024 * 1024              # conservative (v7x per-core)
    vmem_limit = max(16 * 1024 * 1024,
                     min(64 * 1024 * 1024, (vmem_cap * 3) // 4))

    out = pl.pallas_call(
        kernel,
        out_shape=jax.ShapeDtypeStruct((out8, N_pad), f32),
        grid_spec=pltpu.PrefetchScalarGridSpec(
            num_scalar_prefetch=0,
            grid=grid,
            in_specs=[x_spec] + param_specs,
            out_specs=out_spec,
        ),
        compiler_params=pltpu.CompilerParams(
            dimension_semantics=("parallel",),
            vmem_limit_bytes=int(vmem_limit)),
    )(coords_t, *packed)

    return out[:out_features, :N].T


# ----------------------------------------------------------------------------
# Deterministic parameter construction (synthetic — shapes mirror the module)
# ----------------------------------------------------------------------------
def make_params(key, in_features, hidden_half, hidden_layers, out_features):
    def nrm(k, shape, scale):
        return (scale * jax.random.normal(k, shape)).astype(jnp.float32)

    keys = iter(jax.random.split(key, 64))
    params = []

    # first layer (real): linear + scale_orth  -> W (in, h), b (1, h)
    s1 = 1.0 / jnp.sqrt(in_features)
    params += [nrm(next(keys), (in_features, hidden_half), s1),
               nrm(next(keys), (1, hidden_half), s1),
               nrm(next(keys), (in_features, hidden_half), s1),
               nrm(next(keys), (1, hidden_half), s1)]

    # hidden layers (complex): (Wr, Wi, br, bi) for linear and scale_orth
    sh = 1.0 / jnp.sqrt(hidden_half)
    for _ in range(hidden_layers):
        for _lin in range(2):  # linear, scale_orth
            params += [nrm(next(keys), (hidden_half, hidden_half), sh),
                       nrm(next(keys), (hidden_half, hidden_half), sh),
                       nrm(next(keys), (1, hidden_half), sh),
                       nrm(next(keys), (1, hidden_half), sh)]

    # final complex linear: only real part of bias matters for output.real
    params += [nrm(next(keys), (hidden_half, out_features), sh),
               nrm(next(keys), (hidden_half, out_features), sh),
               nrm(next(keys), (1, out_features), sh)]
    return params


# ----------------------------------------------------------------------------
# Pure-JAX complex reference (for correctness check)
# ----------------------------------------------------------------------------
def wire_reference(coords, params, num_hidden, *, omega_f, omega_h, sigma):
    it = iter(params)

    def gabor(z, omega):
        W1, b1, Wo, bo = [jnp.asarray(next(it)) for _ in range(4)]
        lin = z @ W1 + b1
        sy = z @ Wo + bo
        freq = jnp.exp(1j * omega * lin)
        arg = jnp.abs(lin) ** 2 + jnp.abs(sy) ** 2
        return freq * jnp.exp(-(sigma * sigma) * arg)

    z = gabor(coords.astype(jnp.float32), omega_f)
    for _ in range(num_hidden):
        Wr, Wi, br, bi, Wor, Woi, bor, boi = [next(it) for _ in range(8)]
        Wc = Wr + 1j * Wi
        bc = br + 1j * bi
        Woc = Wor + 1j * Woi
        boc = bor + 1j * boi
        lin = z @ Wc + bc
        sy = z @ Woc + boc
        freq = jnp.exp(1j * omega_h * lin)
        arg = jnp.abs(lin) ** 2 + jnp.abs(sy) ** 2
        z = freq * jnp.exp(-(sigma * sigma) * arg)
    Wfr, Wfi, bfr = [next(it) for _ in range(3)]
    out = z @ (Wfr + 1j * Wfi) + bfr  # imag part of final bias doesn't affect .real
    return jnp.real(out)


if __name__ == "__main__":
    # Small, module-consistent shapes.
    in_features = 2
    hidden_features = 32           # module halves this -> hidden_half = 16
    hidden_half = hidden_features // 2
    hidden_layers = 2
    out_features = 3
    N = 256

    first_omega_0 = 10.0
    hidden_omega_0 = 10.0
    scale = 10.0

    key = jax.random.PRNGKey(0)
    k_x, k_p = jax.random.split(key)
    coords = jax.random.uniform(k_x, (N, in_features),
                                minval=-1.0, maxval=1.0, dtype=jnp.float32)
    params = make_params(k_p, in_features, hidden_half, hidden_layers, out_features)

    out = wire_cmplx_forward(
        coords, params, hidden_layers, out_features,
        omega0_first=first_omega_0, omega0_hidden=hidden_omega_0, sigma0=scale,
    )
    out = jax.block_until_ready(out)

    ref = wire_reference(coords, params, hidden_layers,
                         omega_f=first_omega_0, omega_h=hidden_omega_0, sigma=scale)
    assert out.shape == (N, out_features)
    err = float(jnp.max(jnp.abs(out - ref)))
    assert jnp.allclose(out, ref, atol=2e-4, rtol=2e-4), err

    print("KERNEL_OK")
</pallas_src>

<mosaic_0001>
module attributes {stable_mosaic.version = 11 : i64} {
  func.func @_wire_kernel(%arg0: i32, %arg1: memref<2x128xf32, #tpu.memory_space<vmem>>, %arg2: memref<32x2xf32, #tpu.memory_space<vmem>>, %arg3: memref<32x1xf32, #tpu.memory_space<vmem>>, %arg4: memref<2x64x32xf32, #tpu.memory_space<vmem>>, %arg5: memref<2x64x1xf32, #tpu.memory_space<vmem>>, %arg6: memref<8x32xf32, #tpu.memory_space<vmem>>, %arg7: memref<8x1xf32, #tpu.memory_space<vmem>>, %arg8: memref<8x128xf32, #tpu.memory_space<vmem>>) attributes {dimension_semantics = [#tpu.dimension_semantics<parallel>], iteration_bounds = array<i64: 2>, scalar_prefetch = 0 : i64, scratch_operands = 0 : i64, tpu.core_type = #tpu.core_type<tc>, window_params = [{transform_indices = @transform_0, window_bounds = array<i64: 2, 128>}, {pipeline_mode = #tpu.pipeline_mode<synchronous>, transform_indices = @transform_1, window_bounds = array<i64: 32, 2>}, {pipeline_mode = #tpu.pipeline_mode<synchronous>, transform_indices = @transform_2, window_bounds = array<i64: 32, 1>}, {pipeline_mode = #tpu.pipeline_mode<synchronous>, transform_indices = @transform_3, window_bounds = array<i64: 2, 64, 32>}, {pipeline_mode = #tpu.pipeline_mode<synchronous>, transform_indices = @transform_4, window_bounds = array<i64: 2, 64, 1>}, {pipeline_mode = #tpu.pipeline_mode<synchronous>, transform_indices = @transform_5, window_bounds = array<i64: 8, 32>}, {pipeline_mode = #tpu.pipeline_mode<synchronous>, transform_indices = @transform_6, window_bounds = array<i64: 8, 1>}, {transform_indices = @transform_7, window_bounds = array<i64: 8, 128>}]} {
    %c0 = arith.constant 0 : index
    %c0_0 = arith.constant 0 : index
    %0 = vector.load %arg1[%c0, %c0_0] : memref<2x128xf32, #tpu.memory_space<vmem>>, vector<2x128xf32>
    %c0_1 = arith.constant 0 : index
    %c0_2 = arith.constant 0 : index
    %1 = vector.load %arg2[%c0_1, %c0_2] : memref<32x2xf32, #tpu.memory_space<vmem>>, vector<32x2xf32>
    %c0_3 = arith.constant 0 : index
    %c0_4 = arith.constant 0 : index
    %2 = vector.load %arg3[%c0_3, %c0_4] : memref<32x1xf32, #tpu.memory_space<vmem>>, vector<32x1xf32>
    %3 = vector.extract_strided_slice %1 {offsets = [0, 0], sizes = [32, 1], strides = [1, 1]} : vector<32x2xf32> to vector<32x1xf32>
    %4 = vector.extract_strided_slice %0 {offsets = [0, 0], sizes = [1, 128], strides = [1, 1]} : vector<2x128xf32> to vector<1x128xf32>
    %5 = vector.broadcast %3 : vector<32x1xf32> to vector<32x128xf32>
    %6 = vector.broadcast %4 : vector<1x128xf32> to vector<32x128xf32>
    %7 = arith.mulf %5, %6 : vector<32x128xf32>
    %8 = vector.broadcast %2 : vector<32x1xf32> to vector<32x128xf32>
    %9 = arith.addf %7, %8 : vector<32x128xf32>
    %10 = vector.extract_strided_slice %1 {offsets = [0, 1], sizes = [32, 1], strides = [1, 1]} : vector<32x2xf32> to vector<32x1xf32>
    %11 = vector.extract_strided_slice %0 {offsets = [1, 0], sizes = [1, 128], strides = [1, 1]} : vector<2x128xf32> to vector<1x128xf32>
    %12 = vector.broadcast %10 : vector<32x1xf32> to vector<32x128xf32>
    %13 = vector.broadcast %11 : vector<1x128xf32> to vector<32x128xf32>
    %14 = arith.mulf %12, %13 : vector<32x128xf32>
    %15 = arith.addf %9, %14 : vector<32x128xf32>
    %16 = vector.extract_strided_slice %15 {offsets = [0, 0], sizes = [16, 128], strides = [1, 1]} : vector<32x128xf32> to vector<16x128xf32>
    %17 = vector.extract_strided_slice %15 {offsets = [16, 0], sizes = [16, 128], strides = [1, 1]} : vector<32x128xf32> to vector<16x128xf32>
    %18 = arith.mulf %16, %16 : vector<16x128xf32>
    %19 = arith.mulf %17, %17 : vector<16x128xf32>
    %20 = arith.addf %18, %19 : vector<16x128xf32>
    %cst = arith.constant -1.000000e+02 : f32
    %21 = vector.broadcast %cst : f32 to vector<16x128xf32>
    %22 = arith.mulf %21, %20 : vector<16x128xf32>
    %23 = math.exp %22 : vector<16x128xf32>
    %cst_5 = arith.constant 1.000000e+01 : f32
    %24 = vector.broadcast %cst_5 : f32 to vector<16x128xf32>
    %25 = arith.mulf %24, %16 : vector<16x128xf32>
    %26 = math.cos %25 : vector<16x128xf32>
    %27 = arith.mulf %26, %23 : vector<16x128xf32>
    %28 = math.sin %25 : vector<16x128xf32>
    %29 = arith.mulf %28, %23 : vector<16x128xf32>
    %30 = tpu.concatenate %27, %29 in 0 : vector<16x128xf32>, vector<16x128xf32> -> vector<32x128xf32>
    %c0_6 = arith.constant 0 : index
    %c0_7 = arith.constant 0 : index
    %c0_8 = arith.constant 0 : index
    %31 = vector.load %arg4[%c0_6, %c0_7, %c0_8] : memref<2x64x32xf32, #tpu.memory_space<vmem>>, vector<1x64x32xf32>
    %32 = vector.shape_cast %31 : vector<1x64x32xf32> to vector<64x32xf32>
    %c0_9 = arith.constant 0 : index
    %c0_10 = arith.constant 0 : index
    %c0_11 = arith.constant 0 : index
    %33 = vector.load %arg5[%c0_9, %c0_10, %c0_11] : memref<2x64x1xf32, #tpu.memory_space<vmem>>, vector<1x64x1xf32>
    %34 = vector.shape_cast %33 : vector<1x64x1xf32> to vector<64x1xf32>
    %cst_12 = arith.constant dense<0.000000e+00> : vector<64x128xf32>
    %35 = tpu.matmul %32, %30, %cst_12 {dimension_numbers = #tpu.dot_dimension_numbers<[1], [0], [0], [1], [0, 0, 1, 1], [], []>} : vector<64x32xf32>, vector<32x128xf32>, vector<64x128xf32> -> vector<64x128xf32>
    %36 = vector.broadcast %34 : vector<64x1xf32> to vector<64x128xf32>
    %37 = arith.addf %35, %36 : vector<64x128xf32>
    %38 = arith.mulf %37, %37 : vector<64x128xf32>
    %39 = vector.extract_strided_slice %38 {offsets = [0, 0], sizes = [16, 128], strides = [1, 1]} : vector<64x128xf32> to vector<16x128xf32>
    %40 = vector.extract_strided_slice %38 {offsets = [16, 0], sizes = [16, 128], strides = [1, 1]} : vector<64x128xf32> to vector<16x128xf32>
    %41 = arith.addf %39, %40 : vector<16x128xf32>
    %42 = vector.extract_strided_slice %38 {offsets = [32, 0], sizes = [16, 128], strides = [1, 1]} : vector<64x128xf32> to vector<16x128xf32>
    %43 = arith.addf %41, %42 : vector<16x128xf32>
    %44 = vector.extract_strided_slice %38 {offsets = [48, 0], sizes = [16, 128], strides = [1, 1]} : vector<64x128xf32> to vector<16x128xf32>
    %45 = arith.addf %43, %44 : vector<16x128xf32>
    %46 = vector.extract_strided_slice %37 {offsets = [0, 0], sizes = [16, 128], strides = [1, 1]} : vector<64x128xf32> to vector<16x128xf32>
    %47 = vector.extract_strided_slice %37 {offsets = [16, 0], sizes = [16, 128], strides = [1, 1]} : vector<64x128xf32> to vector<16x128xf32>
    %cst_13 = arith.constant -1.000000e+02 : f32
    %48 = vector.broadcast %cst_13 : f32 to vector<16x128xf32>
    %49 = arith.mulf %48, %45 : vector<16x128xf32>
    %cst_14 = arith.constant 1.000000e+01 : f32
    %50 = vector.broadcast %cst_14 : f32 to vector<16x128xf32>
    %51 = arith.mulf %50, %47 : vector<16x128xf32>
    %52 = arith.subf %49, %51 : vector<16x128xf32>
    %53 = math.exp %52 : vector<16x128xf32>
    %cst_15 = arith.constant 1.000000e+01 : f32
    %54 = vector.broadcast %cst_15 : f32 to vector<16x128xf32>
    %55 = arith.mulf %54, %46 : vector<16x128xf32>
    %56 = math.cos %55 : vector<16x128xf32>
    %57 = arith.mulf %56, %53 : vector<16x128xf32>
    %58 = math.sin %55 : vector<16x128xf32>
    %59 = arith.mulf %58, %53 : vector<16x128xf32>
    %60 = tpu.concatenate %57, %59 in 0 : vector<16x128xf32>, vector<16x128xf32> -> vector<32x128xf32>
    %c1 = arith.constant 1 : index
    %c0_16 = arith.constant 0 : index
    %c0_17 = arith.constant 0 : index
    %61 = vector.load %arg4[%c1, %c0_16, %c0_17] : memref<2x64x32xf32, #tpu.memory_space<vmem>>, vector<1x64x32xf32>
    %62 = vector.shape_cast %61 : vector<1x64x32xf32> to vector<64x32xf32>
    %c1_18 = arith.constant 1 : index
    %c0_19 = arith.constant 0 : index
    %c0_20 = arith.constant 0 : index
    %63 = vector.load %arg5[%c1_18, %c0_19, %c0_20] : memref<2x64x1xf32, #tpu.memory_space<vmem>>, vector<1x64x1xf32>
    %64 = vector.shape_cast %63 : vector<1x64x1xf32> to vector<64x1xf32>
    %cst_21 = arith.constant dense<0.000000e+00> : vector<64x128xf32>
    %65 = tpu.matmul %62, %60, %cst_21 {dimension_numbers = #tpu.dot_dimension_numbers<[1], [0], [0], [1], [0, 0, 1, 1], [], []>} : vector<64x32xf32>, vector<32x128xf32>, vector<64x128xf32> -> vector<64x128xf32>
    %66 = vector.broadcast %64 : vector<64x1xf32> to vector<64x128xf32>
    %67 = arith.addf %65, %66 : vector<64x128xf32>
    %68 = arith.mulf %67, %67 : vector<64x128xf32>
    %69 = vector.extract_strided_slice %68 {offsets = [0, 0], sizes = [16, 128], strides = [1, 1]} : vector<64x128xf32> to vector<16x128xf32>
    %70 = vector.extract_strided_slice %68 {offsets = [16, 0], sizes = [16, 128], strides = [1, 1]} : vector<64x128xf32> to vector<16x128xf32>
    %71 = arith.addf %69, %70 : vector<16x128xf32>
    %72 = vector.extract_strided_slice %68 {offsets = [32, 0], sizes = [16, 128], strides = [1, 1]} : vector<64x128xf32> to vector<16x128xf32>
    %73 = arith.addf %71, %72 : vector<16x128xf32>
    %74 = vector.extract_strided_slice %68 {offsets = [48, 0], sizes = [16, 128], strides = [1, 1]} : vector<64x128xf32> to vector<16x128xf32>
    %75 = arith.addf %73, %74 : vector<16x128xf32>
    %76 = vector.extract_strided_slice %67 {offsets = [0, 0], sizes = [16, 128], strides = [1, 1]} : vector<64x128xf32> to vector<16x128xf32>
    %77 = vector.extract_strided_slice %67 {offsets = [16, 0], sizes = [16, 128], strides = [1, 1]} : vector<64x128xf32> to vector<16x128xf32>
    %cst_22 = arith.constant -1.000000e+02 : f32
    %78 = vector.broadcast %cst_22 : f32 to vector<16x128xf32>
    %79 = arith.mulf %78, %75 : vector<16x128xf32>
    %cst_23 = arith.constant 1.000000e+01 : f32
    %80 = vector.broadcast %cst_23 : f32 to vector<16x128xf32>
    %81 = arith.mulf %80, %77 : vector<16x128xf32>
    %82 = arith.subf %79, %81 : vector<16x128xf32>
    %83 = math.exp %82 : vector<16x128xf32>
    %cst_24 = arith.constant 1.000000e+01 : f32
    %84 = vector.broadcast %cst_24 : f32 to vector<16x128xf32>
    %85 = arith.mulf %84, %76 : vector<16x128xf32>
    %86 = math.cos %85 : vector<16x128xf32>
    %87 = arith.mulf %86, %83 : vector<16x128xf32>
    %88 = math.sin %85 : vector<16x128xf32>
    %89 = arith.mulf %88, %83 : vector<16x128xf32>
    %90 = tpu.concatenate %87, %89 in 0 : vector<16x128xf32>, vector<16x128xf32> -> vector<32x128xf32>
    %c0_25 = arith.constant 0 : index
    %c0_26 = arith.constant 0 : index
    %91 = vector.load %arg6[%c0_25, %c0_26] : memref<8x32xf32, #tpu.memory_space<vmem>>, vector<8x32xf32>
    %c0_27 = arith.constant 0 : index
    %c0_28 = arith.constant 0 : index
    %92 = vector.load %arg7[%c0_27, %c0_28] : memref<8x1xf32, #tpu.memory_space<vmem>>, vector<8x1xf32>
    %cst_29 = arith.constant dense<0.000000e+00> : vector<8x128xf32>
    %93 = tpu.matmul %91, %90, %cst_29 {dimension_numbers = #tpu.dot_dimension_numbers<[1], [0], [0], [1], [0, 0, 1, 1], [], []>} : vector<8x32xf32>, vector<32x128xf32>, vector<8x128xf32> -> vector<8x128xf32>
    %94 = vector.broadcast %92 : vector<8x1xf32> to vector<8x128xf32>
    %95 = arith.addf %93, %94 : vector<8x128xf32>
    %c0_30 = arith.constant 0 : index
    %c0_31 = arith.constant 0 : index
    %96 = vector.load %arg8[%c0_30, %c0_31] : memref<8x128xf32, #tpu.memory_space<vmem>>, vector<8x128xf32>
    tpu.vector_store %arg8[%c0_30, %c0_31], %95 {strides = array<i32>} : memref<8x128xf32, #tpu.memory_space<vmem>>, vector<8x128xf32>,
    return
  }
  func.func @transform_0(%arg0: i32) -> (i32, i32) {
    %c0_i32 = arith.constant 0 : i32
    %c0_i32_0 = arith.constant 0 : i32
    return %c0_i32, %arg0 : i32, i32
  }
  func.func @transform_1(%arg0: i32) -> (i32, i32) {
    %c0_i32 = arith.constant 0 : i32
    %c0_i32_0 = arith.constant 0 : i32
    %c0_i32_1 = arith.constant 0 : i32
    return %c0_i32, %c0_i32_0 : i32, i32
  }
  func.func @transform_2(%arg0: i32) -> (i32, i32) {
    %c0_i32 = arith.constant 0 : i32
    %c0_i32_0 = arith.constant 0 : i32
    %c0_i32_1 = arith.constant 0 : i32
    return %c0_i32, %c0_i32_0 : i32, i32
  }
  func.func @transform_3(%arg0: i32) -> (i32, i32, i32) {
    %c0_i32 = arith.constant 0 : i32
    %c0_i32_0 = arith.constant 0 : i32
    %c0_i32_1 = arith.constant 0 : i32
    %c0_i32_2 = arith.constant 0 : i32
    return %c0_i32, %c0_i32_0, %c0_i32_1 : i32, i32, i32
  }
  func.func @transform_4(%arg0: i32) -> (i32, i32, i32) {
    %c0_i32 = arith.constant 0 : i32
    %c0_i32_0 = arith.constant 0 : i32
    %c0_i32_1 = arith.constant 0 : i32
    %c0_i32_2 = arith.constant 0 : i32
    return %c0_i32, %c0_i32_0, %c0_i32_1 : i32, i32, i32
  }
  func.func @transform_5(%arg0: i32) -> (i32, i32) {
    %c0_i32 = arith.constant 0 : i32
    %c0_i32_0 = arith.constant 0 : i32
    %c0_i32_1 = arith.constant 0 : i32
    return %c0_i32, %c0_i32_0 : i32, i32
  }
  func.func @transform_6(%arg0: i32) -> (i32, i32) {
    %c0_i32 = arith.constant 0 : i32
    %c0_i32_0 = arith.constant 0 : i32
    %c0_i32_1 = arith.constant 0 : i32
    return %c0_i32, %c0_i32_0 : i32, i32
  }
  func.func @transform_7(%arg0: i32) -> (i32, i32) {
    %c0_i32 = arith.constant 0 : i32
    %c0_i32_0 = arith.constant 0 : i32
    return %c0_i32, %arg0 : i32, i32
  }
}

</mosaic_0001>

<llo_original>
// kernel: tpu_custom_call.1
$region0: #{tpu_custom_call.1}
  #allocation0 [shape = 'u32[]', space=smem, size = 0x4, offset = 0x4, fixed_abs, tag = 'smem constant byte address 0x4 - core index']
  #allocation1 [shape = 'u32[144,128]{1,0:T(1,128)}', space=vmem, size = 0x12000, scoped, tag = 'internal scratch']
  %s0 = inlined_call_operand.vmem [shape: f32[2,256], index: 0, kind: input, shape index: {}]
  %s1 = inlined_call_operand.vmem [shape: f32[32,2], index: 1, kind: input, shape index: {}]
  %s2 = inlined_call_operand.vmem [shape: f32[32,1], index: 2, kind: input, shape index: {}]
  %s3 = inlined_call_operand.vmem [shape: f32[2,64,32], index: 3, kind: input, shape index: {}]
  %s4 = inlined_call_operand.vmem [shape: f32[2,64,1], index: 4, kind: input, shape index: {}]
  %s5 = inlined_call_operand.vmem [shape: f32[8,32], index: 5, kind: input, shape index: {}]
  %s6 = inlined_call_operand.vmem [shape: f32[8,1], index: 6, kind: input, shape index: {}]
  %s7 = inlined_call_operand.hbm [shape: f32[8,256], index: 7, kind: output, shape index: {}]
  %s8 = sld [smem:[#allocation0]]
  $region61: #{tpu_custom_call.1} parent=0
    _
  %s10 = ssub.s32 1, %s8
  %s11 = scalar_select 0, %s10, %s8
  $region1: #{tpu_custom_call.1} parent=0
    #allocation2 [shape = 'u8[8192]{0}', space=vmem, size = 0x2000, scoped, tag = 'output window, operand 0']
    #allocation3 [shape = 's32[2]{0}', space=sflag, size = 0x8, scoped, tag = 'scoped memory for tpu_custom_call.1']
    %12 = vsyncpa [#allocation3], 0
    %s13 = scalar_lea.sflag [#allocation3], 1
    %14 = vsyncpa %s13, 0
    loop: start=0, step=1, limit=4
    $region2: #{tpu_custom_call.1} parent=1 // loop_pre_header
      _
    $region3: #{tpu_custom_call.1} parent=1 // loop_header
      %s16 = sphi 0, %s20
      %p17 = scmp.ge.s32.totalorder %s16, 4
      %s26 = sphi 0, %s28
      %s29 = sphi 0, %s26
      %s30 = sphi 0, %s29
      %s46 = sphi 0, %s30
      %s50 = sphi 0, %s50
      %s52 = sphi 0, %s50
      %s53 = sphi 0, %s52
      %s67 = sphi 0, %s53
      %s71 = sphi 0, %s71
      %s73 = sphi 0, %s71
      %s74 = sphi 0, %s73
      %s88 = sphi 0, %s74
      %s92 = sphi 0, %s92
      %s94 = sphi 0, %s92
      %s95 = sphi 0, %s94
      %s109 = sphi 0, %s95
      %s113 = sphi 0, %s113
      %s115 = sphi 0, %s113
      %s116 = sphi 0, %s115
      %s130 = sphi 0, %s116
      %s134 = sphi 0, %s134
      %s136 = sphi 0, %s134
      %s137 = sphi 0, %s136
      %s151 = sphi 0, %s137
      %s155 = sphi 0, %s155
      %s157 = sphi 0, %s155
      %s158 = sphi 0, %s157
      %s172 = sphi 0, %s158
      %s178 = sphi 0, %s180
      %s181 = sphi 0, %s178
      %s182 = sphi 0, %s181
      %s198 = sphi 0, %s182
    $region4: #{tpu_custom_call.1} parent=1 // loop_header_branch
      %19 = sbr.rel (%p17) target = $region8
    $region5: #{tpu_custom_call.1} parent=1 // loop_body
      %s21 = ssub.s32 %s16, 1
      %s22 = ssub.s32 %s16, 2
      %s23 = sadd.s32 %s16, 1
      %s24 = ssub.s32 %s16, %s23
      %p25 = scmp.eq.s32.totalorder %s24, 0
      %s27 = sadd.s32 %s26, 1
      %s28 = scalar_select %p25, %s26, %s27
      %p31 = pneg %p25
      %p32 = scmp.eq.s32.totalorder %s16, 1
      %p33 = por %p31, %p32
      %p34 = scmp.ne.s32.totalorder %s26, %s29
      %p35 = scmp.eq.s32.totalorder %s16, 0
      %p36 = por %p34, %p35
      %p37 = scmp.ne.s32.totalorder %s26, %s29
      %p38 = scmp.eq.s32.totalorder %s21, 1
      %p39 = por %p37, %p38
      %p40 = scmp.ne.s32.totalorder %s29, %s30
      %p41 = scmp.eq.s32.totalorder %s21, 0
      %p42 = por %p40, %p41
      %p43 = scmp.ne.s32.totalorder %s29, %s30
      %p44 = scmp.eq.s32.totalorder %s22, 1
      %p45 = por %p43, %p44
      %p47 = scmp.ne.s32.totalorder %s30, %s46
      %p48 = scmp.eq.s32.totalorder %s22, 0
      %p49 = por %p47, %p48
      %s51 = sadd.s32 %s50, 1
      %p54 = scmp.eq.s32.totalorder %s16, 1
      %p55 = scmp.ne.s32.totalorder %s50, %s52
      %p56 = scmp.eq.s32.totalorder %s16, 0
      %p57 = por %p55, %p56
      %p58 = scmp.ne.s32.totalorder %s50, %s52
      %p59 = scmp.eq.s32.totalorder %s21, 1
      %p60 = por %p58, %p59
      %p61 = scmp.ne.s32.totalorder %s52, %s53
      %p62 = scmp.eq.s32.totalorder %s21, 0
      %p63 = por %p61, %p62
      %p64 = scmp.ne.s32.totalorder %s52, %s53
      %p65 = scmp.eq.s32.totalorder %s22, 1
      %p66 = por %p64, %p65
      %p68 = scmp.ne.s32.totalorder %s53, %s67
      %p69 = scmp.eq.s32.totalorder %s22, 0
      %p70 = por %p68, %p69
      %s72 = sadd.s32 %s71, 1
      %p75 = scmp.eq.s32.totalorder %s16, 1
      %p76 = scmp.ne.s32.totalorder %s71, %s73
      %p77 = scmp.eq.s32.totalorder %s16, 0
      %p78 = por %p76, %p77
      %p79 = scmp.ne.s32.totalorder %s71, %s73
      %p80 = scmp.eq.s32.totalorder %s21, 1
      %p81 = por %p79, %p80
      %p82 = scmp.ne.s32.totalorder %s73, %s74
      %p83 = scmp.eq.s32.totalorder %s21, 0
      %p84 = por %p82, %p83
      %p85 = scmp.ne.s32.totalorder %s73, %s74
      %p86 = scmp.eq.s32.totalorder %s22, 1
      %p87 = por %p85, %p86
      %p89 = scmp.ne.s32.totalorder %s74, %s88
      %p90 = scmp.eq.s32.totalorder %s22, 0
      %p91 = por %p89, %p90
      %s93 = sadd.s32 %s92, 1
      %p96 = scmp.eq.s32.totalorder %s16, 1
      %p97 = scmp.ne.s32.totalorder %s92, %s94
      %p98 = scmp.eq.s32.totalorder %s16, 0
      %p99 = por %p97, %p98
      %p100 = scmp.ne.s32.totalorder %s92, %s94
      %p101 = scmp.eq.s32.totalorder %s21, 1
      %p102 = por %p100, %p101
      %p103 = scmp.ne.s32.totalorder %s94, %s95
      %p104 = scmp.eq.s32.totalorder %s21, 0
      %p105 = por %p103, %p104
      %p106 = scmp.ne.s32.totalorder %s94, %s95
      %p107 = scmp.eq.s32.totalorder %s22, 1
      %p108 = por %p106, %p107
      %p110 = scmp.ne.s32.totalorder %s95, %s109
      %p111 = scmp.eq.s32.totalorder %s22, 0
      %p112 = por %p110, %p111
      %s114 = sadd.s32 %s113, 1
      %p117 = scmp.eq.s32.totalorder %s16, 1
      %p118 = scmp.ne.s32.totalorder %s113, %s115
      %p119 = scmp.eq.s32.totalorder %s16, 0
      %p120 = por %p118, %p119
      %p121 = scmp.ne.s32.totalorder %s113, %s115
      %p122 = scmp.eq.s32.totalorder %s21, 1
      %p123 = por %p121, %p122
      %p124 = scmp.ne.s32.totalorder %s115, %s116
      %p125 = scmp.eq.s32.totalorder %s21, 0
      %p126 = por %p124, %p125
      %p127 = scmp.ne.s32.totalorder %s115, %s116
      %p128 = scmp.eq.s32.totalorder %s22, 1
      %p129 = por %p127, %p128
      %p131 = scmp.ne.s32.totalorder %s116, %s130
      %p132 = scmp.eq.s32.totalorder %s22, 0
      %p133 = por %p131, %p132
      %s135 = sadd.s32 %s134, 1
      %p138 = scmp.eq.s32.totalorder %s16, 1
      %p139 = scmp.ne.s32.totalorder %s134, %s136
      %p140 = scmp.eq.s32.totalorder %s16, 0
      %p141 = por %p139, %p140
      %p142 = scmp.ne.s32.totalorder %s134, %s136
      %p143 = scmp.eq.s32.totalorder %s21, 1
      %p144 = por %p142, %p143
      %p145 = scmp.ne.s32.totalorder %s136, %s137
      %p146 = scmp.eq.s32.totalorder %s21, 0
      %p147 = por %p145, %p146
      %p148 = scmp.ne.s32.totalorder %s136, %s137
      %p149 = scmp.eq.s32.totalorder %s22, 1
      %p150 = por %p148, %p149
      %p152 = scmp.ne.s32.totalorder %s137, %s151
      %p153 = scmp.eq.s32.totalorder %s22, 0
      %p154 = por %p152, %p153
      %s156 = sadd.s32 %s155, 1
      %p159 = scmp.eq.s32.totalorder %s16, 1
      %p160 = scmp.ne.s32.totalorder %s155, %s157
      %p161 = scmp.eq.s32.totalorder %s16, 0
      %p162 = por %p160, %p161
      %p163 = scmp.ne.s32.totalorder %s155, %s157
      %p164 = scmp.eq.s32.totalorder %s21, 1
      %p165 = por %p163, %p164
      %p166 = scmp.ne.s32.totalorder %s157, %s158
      %p167 = scmp.eq.s32.totalorder %s21, 0
      %p168 = por %p166, %p167
      %p169 = scmp.ne.s32.totalorder %s157, %s158
      %p170 = scmp.eq.s32.totalorder %s22, 1
      %p171 = por %p169, %p170
      %p173 = scmp.ne.s32.totalorder %s158, %s172
      %p174 = scmp.eq.s32.totalorder %s22, 0
      %p175 = por %p173, %p174
      %s176 = ssub.s32 %s16, %s23
      %p177 = scmp.eq.s32.totalorder %s176, 0
      %s179 = sadd.s32 %s178, 1
      %s180 = scalar_select %p177, %s178, %s179
      %p183 = pneg %p177
      %p184 = scmp.eq.s32.totalorder %s16, 1
      %p185 = por %p183, %p184
      %p186 = scmp.ne.s32.totalorder %s178, %s181
      %p187 = scmp.eq.s32.totalorder %s16, 0
      %p188 = por %p186, %p187
      %p189 = scmp.ne.s32.totalorder %s178, %s181
      %p190 = scmp.eq.s32.totalorder %s21, 1
      %p191 = por %p189, %p190
      %p192 = scmp.ne.s32.totalorder %s181, %s182
      %p193 = scmp.eq.s32.totalorder %s21, 0
      %p194 = por %p192, %p193
      %p195 = scmp.ne.s32.totalorder %s181, %s182
      %p196 = scmp.eq.s32.totalorder %s22, 1
      %p197 = por %p195, %p196
      %p199 = scmp.ne.s32.totalorder %s182, %s198
      %p200 = scmp.eq.s32.totalorder %s22, 0
      %p201 = por %p199, %p200
      %p202 = scmp.le.s32.totalorder 1, %s16
      %p203 = scmp.lt.s32.totalorder %s16, 3
      %p204 = pnand %p202, %p203
      %p205 = pneg %p204
      // Predicated region
      $region9: #{tpu_custom_call.1} parent=5 // pred_check
        _
      $region10: #{tpu_custom_call.1} parent=5 // pred_check_branch
        %207 = sbr.rel (%p204) target = $region12
      $region11: #{tpu_custom_call.1} parent=5 // pred_region
        %s208 = ssub.s32 %s16, 1
        // Predicated region
        $region13: #{tpu_custom_call.1} parent=11 // pred_check
          %p209 = pneg %p63
        $region14: #{tpu_custom_call.1} parent=11 // pred_check_branch
          %211 = sbr.rel (%p209) target = $region16
        $region15: #{tpu_custom_call.1} parent=11 // pred_region
          _
        $region16: #{tpu_custom_call.1} parent=11 // pred_fallthru
          _
        // Predicated region
        $region17: #{tpu_custom_call.1} parent=11 // pred_check
          %p212 = pneg %p84
        $region18: #{tpu_custom_call.1} parent=11 // pred_check_branch
          %214 = sbr.rel (%p212) target = $region20
        $region19: #{tpu_custom_call.1} parent=11 // pred_region
          _
        $region20: #{tpu_custom_call.1} parent=11 // pred_fallthru
          _
        // Predicated region
        $region21: #{tpu_custom_call.1} parent=11 // pred_check
          %p215 = pneg %p105
        $region22: #{tpu_custom_call.1} parent=11 // pred_check_branch
          %217 = sbr.rel (%p215) target = $region24
        $region23: #{tpu_custom_call.1} parent=11 // pred_region
          _
        $region24: #{tpu_custom_call.1} parent=11 // pred_fallthru
          _
        // Predicated region
        $region25: #{tpu_custom_call.1} parent=11 // pred_check
          %p218 = pneg %p126
        $region26: #{tpu_custom_call.1} parent=11 // pred_check_branch
          %220 = sbr.rel (%p218) target = $region28
        $region27: #{tpu_custom_call.1} parent=11 // pred_region
          _
        $region28: #{tpu_custom_call.1} parent=11 // pred_fallthru
          _
        // Predicated region
        $region29: #{tpu_custom_call.1} parent=11 // pred_check
          %p221 = pneg %p147
        $region30: #{tpu_custom_call.1} parent=11 // pred_check_branch
          %223 = sbr.rel (%p221) target = $region32
        $region31: #{tpu_custom_call.1} parent=11 // pred_region
          _
        $region32: #{tpu_custom_call.1} parent=11 // pred_fallthru
          _
        // Predicated region
        $region33: #{tpu_custom_call.1} parent=11 // pred_check
          %p224 = pneg %p168
        $region34: #{tpu_custom_call.1} parent=11 // pred_check_branch
          %226 = sbr.rel (%p224) target = $region36
        $region35: #{tpu_custom_call.1} parent=11 // pred_region
          _
        $region36: #{tpu_custom_call.1} parent=11 // pred_fallthru
          _
      $region12: #{tpu_custom_call.1} parent=5 // pred_fallthru
        _
      %p227 = scmp.lt.s32.totalorder %s16, 2
      // Predicated region
      $region37: #{tpu_custom_call.1} parent=5 // pred_check
        %p228 = pneg %p227
      $region38: #{tpu_custom_call.1} parent=5 // pred_check_branch
        %230 = sbr.rel (%p228) target = $region40
      $region39: #{tpu_custom_call.1} parent=5 // pred_region
        // Predicated region
        $region41: #{tpu_custom_call.1} parent=39 // pred_check
          %p231 = pneg %p36
        $region42: #{tpu_custom_call.1} parent=39 // pred_check_branch
          %233 = sbr.rel (%p231) target = $region44
        $region43: #{tpu_custom_call.1} parent=39 // pred_region
          %p234 = scmp.lt.s32.totalorder %s16, 1
          %s235 = scalar_select %p234, %s16, 1
          %s236 = smul.addr %s235, 2
          %s237 = scalar_lea.vmem %s0, %s236
        $region44: #{tpu_custom_call.1} parent=39 // pred_fallthru
          _
      $region40: #{tpu_custom_call.1} parent=5 // pred_fallthru
        _
      %p238 = scmp.le.s32.totalorder 1, %s16
      %p239 = scmp.lt.s32.totalorder %s16, 3
      %p240 = pnand %p238, %p239
      %p241 = pneg %p240
      // Predicated region
      $region45: #{tpu_custom_call.1} parent=5 // pred_check
        _
      $region46: #{tpu_custom_call.1} parent=5 // pred_check_branch
        %243 = sbr.rel (%p240) target = $region48
      $region47: #{tpu_custom_call.1} parent=5 // pred_region
        %s244 = ssub.s32 %s16, 1
        %p245 = scmp.lt.s32.totalorder %s21, 1
        %s246 = scalar_select %p245, %s21, 1
        %s247 = smul.addr %s246, 2
        %s248 = scalar_lea.vmem %s0, %s247
        %p249 = pneg %p42
        %p250 = pneg %p39
        %p251 = pneg %p63
        %p252 = pneg %p60
        %p253 = pneg %p84
        %p254 = pneg %p81
        %p255 = pneg %p105
        %p256 = pneg %p102
        %p257 = pneg %p126
        %p258 = pneg %p123
        %p259 = pneg %p147
        %p260 = pneg %p144
        %p261 = pneg %p168
        %p262 = pneg %p165
        %p263 = pneg %p194
        %p264 = pneg %p191
        %s265 = sand.u32 %s181, 1
        %s266 = scalar_lea.sflag [#allocation3], %s265
        %s267 = sand.u32 %s181, 1
        %s268 = smul.addr %s267, 8
        %s269 = scalar_lea.vmem [#allocation2], %s268
        %p270 = scmp.lt.s32.totalorder %s21, 1
        %s271 = scalar_select %p270, %s21, 1
        %s272 = smul.addr %s271, 2
        %s273 = scalar_lea.vmem %s0, %s272
        %v274 = vld [vmem:[%s273] sm:$0x3]
        %v275 = vld [vmem:[%s1] sm:$0xff]
        %v276 = vld [vmem:[%s1 + $0x8] sm:$0xff]
        %v277 = vld [vmem:[%s1 + $0x10] sm:$0xff]
        %v278 = vld [vmem:[%s1 + $0x18] sm:$0xff]
        %v279 = vld [vmem:[%s2] sm:$0xff]
        %v280 = vld [vmem:[%s2 + $0x8] sm:$0xff]
        %v281 = vld [vmem:[%s2 + $0x10] sm:$0xff]
        %v282 = vld [vmem:[%s2 + $0x18] sm:$0xff]
        %284 = vset.pattern.permute.xlu0 0
        %285 = vperm.xlu0 %284, %v275
        %v286 = vpop.permute.xlu0 %285
        %289 = vset.pattern.permute.xlu0 0
        %290 = vperm.xlu0 %289, %v276
        %v291 = vpop.permute.xlu0 %290
        %294 = vset.pattern.permute.xlu0 0
        %295 = vperm.xlu0 %294, %v277
        %v296 = vpop.permute.xlu0 %295
        %299 = vset.pattern.permute.xlu0 0
        %300 = vperm.xlu0 %299, %v278
        %v301 = vpop.permute.xlu0 %300
        %v303 = vlaneseq
        %v304 = vshrl.u32 %v303, 7
        %v305 = vsub.s32 0, %v304
        %v306 = vrot.slane %v274, %v305
        %v307 = vmul.f32 %v286, %v306
        %v308 = vmul.f32 %v291, %v306
        %v309 = vmul.f32 %v296, %v306
        %v310 = vmul.f32 %v301, %v306
        %312 = vset.pattern.permute.xlu0 0
        %313 = vperm.xlu0 %312, %v279
        %v314 = vpop.permute.xlu0 %313
        %317 = vset.pattern.permute.xlu0 0
        %318 = vperm.xlu0 %317, %v280
        %v319 = vpop.permute.xlu0 %318
        %322 = vset.pattern.permute.xlu0 0
        %323 = vperm.xlu0 %322, %v281
        %v324 = vpop.permute.xlu0 %323
        %327 = vset.pattern.permute.xlu0 0
        %328 = vperm.xlu0 %327, %v282
        %v329 = vpop.permute.xlu0 %328
        %v331 = vadd.f32 %v307, %v314
        %v332 = vadd.f32 %v308, %v319
        %v333 = vadd.f32 %v309, %v324
        %v334 = vadd.f32 %v310, %v329
        %335 = vset.pattern.permute.xlu0 1
        %336 = vperm.xlu0 %335, %v275
        %v337 = vpop.permute.xlu0 %336
        %339 = vset.pattern.permute.xlu0 1
        %340 = vperm.xlu0 %339, %v276
        %v341 = vpop.permute.xlu0 %340
        %343 = vset.pattern.permute.xlu0 1
        %344 = vperm.xlu0 %343, %v277
        %v345 = vpop.permute.xlu0 %344
        %347 = vset.pattern.permute.xlu0 1
        %348 = vperm.xlu0 %347, %v278
        %v349 = vpop.permute.xlu0 %348
        %v351 = vlaneseq
        %v352 = vshrl.u32 %v351, 7
        %v353 = vsub.s32 1, %v352
        %v354 = vrot.slane %v274, %v353
        %v355 = vmul.f32 %v337, %v354
        %v356 = vmul.f32 %v341, %v354
        %v357 = vmul.f32 %v345, %v354
        %v358 = vmul.f32 %v349, %v354
        %v359 = vadd.f32 %v331, %v355
        %v360 = vadd.f32 %v332, %v356
        %v361 = vadd.f32 %v333, %v357
        %v362 = vadd.f32 %v334, %v358
        %v363 = vmul.f32 %v359, %v359
        %v364 = vmul.f32 %v360, %v360
        %v365 = vmul.f32 %v361, %v361
        %v366 = vmul.f32 %v362, %v362
        %v367 = vadd.f32 %v363, %v365
        %v368 = vadd.f32 %v364, %v366
        %v369 = vmul.f32 %v367, -100.0
        %v370 = vmul.f32 %v368, -100.0
        %v371 = vmul.f32 %v369, 1.442695
        %v372 = vpow.pop %v371
        %v373 = vmul.f32 %v370, 1.442695
        %v374 = vpow.pop %v373
        %v375 = vmul.f32 %v359, 10.0
        %v376 = vmul.f32 %v360, 10.0
        %v377 = vand.u32 2147483647, %v375
        %vm378 = vcmp.le.f32.partialorder %v377, 0.7853982
        %vm379 = vcmp.lt.s32.totalorder %v375, 0
        %v380 = vand.u32 %v375, 2139095040
        %v381 = vshrl.u32 %v380, 23
        %v382 = vsub.s32 %v381, 127
        %v383 = vand.u32 2147483647, %v375
        %v384 = vand.u32 %v383, 8388607
        %v385 = vor.u32 %v384, 8388608
        %v386 = vsub.s32 0, %v385
        %v387 = vadd.s32 %v382, 1
        %vm388 = vcmp.gt.s32.totalorder %v387, 0
        %v389 = vsel %vm388, %v387, 0
        %v390 = vshrl.u32 %v389, 5
        %v391 = vand.u32 %v389, 31
        %v392 = vsub.s32 32, %v391
        %v393 = vshrl.u32 683565275, %v392
        %v394 = vshll.u32 683565275, %v391
        %v395 = vshrl.u32 2475754826, %v392
        %v396 = vor.u32 %v394, %v395
        %v397 = vshll.u32 2475754826, %v391
        %v398 = vshrl.u32 2131351028, %v392
        %v399 = vor.u32 %v397, %v398
        %v400 = vshll.u32 2131351028, %v391
        %v401 = vshrl.u32 2102212464, %v392
        %v402 = vor.u32 %v400, %v401
        %v403 = vshll.u32 2102212464, %v391
        %v404 = vshrl.u32 920167782, %v392
        %v405 = vor.u32 %v403, %v404
        %v406 = vshll.u32 920167782, %v391
        %v407 = vshrl.u32 1326507024, %v392
        %v408 = vor.u32 %v406, %v407
        %vm409 = vcmp.lt.s32.totalorder %v390, 1
        %vm410 = vcmp.lt.s32.totalorder %v390, 2
        %vm411 = vcmp.lt.s32.totalorder %v390, 3
        %vm412 = vcmp.lt.s32.totalorder %v390, 4
        %v413 = vsel %vm409, %v393, %v396
        %v414 = vsel %vm412, %v402, 2102212464
        %v415 = vsel %vm411, %v399, %v414
        %v416 = vsel %vm410, %v413, %v415
        %v417 = vsel %vm409, %v396, %v399
        %v418 = vsel %vm412, %v405, 920167782
        %v419 = vsel %vm411, %v402, %v418
        %v420 = vsel %vm410, %v417, %v419
        %v421 = vsel %vm409, %v399, %v402
        %v422 = vsel %vm412, %v408, 1326507024
        %v423 = vsel %vm411, %v405, %v422
        %v424 = vsel %vm410, %v421, %v423
        %v425 = vshll.u32 %v385, 8
        %v426 = vmul.u32.u64.compose %v425, %v424
        %v427 = vextract.low.u32 %v426
        %v428 = vextract.high.u32 %v426
        %v429 = vmul.u32.u64.compose %v425, %v420
        %v430 = vextract.low.u32 %v429
        %v431 = vextract.high.u32 %v429
        %v432 = vmul.u32 %v425, %v416
        %v433 = vadd.s32 %v428, %v430
        %vm434 = vc.u32 %v428, %v430
        %v435 = vadd.s32 %v431, 1
        %v436 = vsel %vm434, %v435, %v431
        %v437 = vadd.s32 %v432, %v436
        %v438 = vadd.s32 %v437, 536870912
        %v439 = vshrl.u32 %v438, 30
        %v440 = vshll.u32 %v439, 30
        %v441 = vsub.s32 %v437, %v440
        %vm442 = vcmp.lt.s32.totalorder %v441, 0
        %v443 = vsub.s32 0, %v441
        %v444 = vsel %vm442, %v443, %v441
        %v445 = vclz %v444
        %v446 = vsub.s32 %v445, 2
        %vm447 = vcmp.gt.s32.totalorder 0, %v446
        %v448 = vsel %vm447, 0, %v446
        %v449 = vsub.s32 32, %v448
        %v450 = vshll.u32 %v441, %v448
        %v451 = vshrl.u32 %v433, %v449
        %v452 = vor.u32 %v450, %v451
        %v453 = vsub.s32 4294967266, %v448
        %v454 = vadd.s32 %v453, 127
        %v455 = vshll.u32 %v454, 23
        %v456 = vor.u32 4788187, %v455
        %v457 = vand.u32 2147483647, %v456
        %v459 = vcvt.s32.f32 %v452
        %v460 = vmul.f32 %v459, %v457
        %v461 = vxor.u32 %v460, 2147483648
        %v462 = vsel %vm379, %v461, %v460
        %v463 = vsub.s32 4, %v439
        %v464 = vsel %vm379, %v463, %v439
        %v465 = vsel %vm378, %v375, %v462
        %v466 = vsel %vm378, 0, %v464
        %v467 = vcosq.f32.pop %v465
        %v468 = vsinq.f32.pop %v465
        %vm469 = vweird.f32 %v375
        %v470 = vand.u32 %v466, 3
        %vm471 = vcmp.lt.s32.totalorder %v470, 2
        %vm472 = vcmp.eq.s32.totalorder %v470, 0
        %v473 = vxor.u32 %v468, 2147483648
        %v474 = vsel %vm472, %v467, %v473
        %vm475 = vcmp.eq.s32.totalorder %v470, 2
        %v476 = vxor.u32 %v467, 2147483648
        %v477 = vsel %vm475, %v476, %v468
        %v478 = vsel %vm471, %v474, %v477
        %v479 = vsel %vm469, nan, %v478
        %v480 = vand.u32 2147483647, %v376
        %vm481 = vcmp.le.f32.partialorder %v480, 0.7853982
        %vm482 = vcmp.lt.s32.totalorder %v376, 0
        %v483 = vand.u32 %v376, 2139095040
        %v484 = vshrl.u32 %v483, 23
        %v485 = vsub.s32 %v484, 127
        %v486 = vand.u32 2147483647, %v376
        %v487 = vand.u32 %v486, 8388607
        %v488 = vor.u32 %v487, 8388608
        %v489 = vsub.s32 0, %v488
        %v490 = vadd.s32 %v485, 1
        %vm491 = vcmp.gt.s32.totalorder %v490, 0
        %v492 = vsel %vm491, %v490, 0
        %v493 = vshrl.u32 %v492, 5
        %v494 = vand.u32 %v492, 31
        %v495 = vsub.s32 32, %v494
        %v496 = vshrl.u32 683565275, %v495
        %v497 = vshll.u32 683565275, %v494
        %v498 = vshrl.u32 2475754826, %v495
        %v499 = vor.u32 %v497, %v498
        %v500 = vshll.u32 2475754826, %v494
        %v501 = vshrl.u32 2131351028, %v495
        %v502 = vor.u32 %v500, %v501
        %v503 = vshll.u32 2131351028, %v494
        %v504 = vshrl.u32 2102212464, %v495
        %v505 = vor.u32 %v503, %v504
        %v506 = vshll.u32 2102212464, %v494
        %v507 = vshrl.u32 920167782, %v495
        %v508 = vor.u32 %v506, %v507
        %v509 = vshll.u32 920167782, %v494
        %v510 = vshrl.u32 1326507024, %v495
        %v511 = vor.u32 %v509, %v510
        %vm512 = vcmp.lt.s32.totalorder %v493, 1
        %vm513 = vcmp.lt.s32.totalorder %v493, 2
        %vm514 = vcmp.lt.s32.totalorder %v493, 3
        %vm515 = vcmp.lt.s32.totalorder %v493, 4
        %v516 = vsel %vm512, %v496, %v499
        %v517 = vsel %vm515, %v505, 2102212464
        %v518 = vsel %vm514, %v502, %v517
        %v519 = vsel %vm513, %v516, %v518
        %v520 = vsel %vm512, %v499, %v502
        %v521 = vsel %vm515, %v508, 920167782
        %v522 = vsel %vm514, %v505, %v521
        %v523 = vsel %vm513, %v520, %v522
        %v524 = vsel %vm512, %v502, %v505
        %v525 = vsel %vm515, %v511, 1326507024
        %v526 = vsel %vm514, %v508, %v525
        %v527 = vsel %vm513, %v524, %v526
        %v528 = vshll.u32 %v488, 8
        %v529 = vmul.u32.u64.compose %v528, %v527
        %v530 = vextract.low.u32 %v529
        %v531 = vextract.high.u32 %v529
        %v532 = vmul.u32.u64.compose %v528, %v523
        %v533 = vextract.low.u32 %v532
        %v534 = vextract.high.u32 %v532
        %v535 = vmul.u32 %v528, %v519
        %v536 = vadd.s32 %v531, %v533
        %vm537 = vc.u32 %v531, %v533
        %v538 = vadd.s32 %v534, 1
        %v539 = vsel %vm537, %v538, %v534
        %v540 = vadd.s32 %v535, %v539
        %v541 = vadd.s32 %v540, 536870912
        %v542 = vshrl.u32 %v541, 30
        %v543 = vshll.u32 %v542, 30
        %v544 = vsub.s32 %v540, %v543
        %vm545 = vcmp.lt.s32.totalorder %v544, 0
        %v546 = vsub.s32 0, %v544
        %v547 = vsel %vm545, %v546, %v544
        %v548 = vclz %v547
        %v549 = vsub.s32 %v548, 2
        %vm550 = vcmp.gt.s32.totalorder 0, %v549
        %v551 = vsel %vm550, 0, %v549
        %v552 = vsub.s32 32, %v551
        %v553 = vshll.u32 %v544, %v551
        %v554 = vshrl.u32 %v536, %v552
        %v555 = vor.u32 %v553, %v554
        %v556 = vsub.s32 4294967266, %v551
        %v557 = vadd.s32 %v556, 127
        %v558 = vshll.u32 %v557, 23
        %v559 = vor.u32 4788187, %v558
        %v560 = vand.u32 2147483647, %v559
        %v562 = vcvt.s32.f32 %v555
        %v563 = vmul.f32 %v562, %v560
        %v564 = vxor.u32 %v563, 2147483648
        %v565 = vsel %vm482, %v564, %v563
        %v566 = vsub.s32 4, %v542
        %v567 = vsel %vm482, %v566, %v542
        %v568 = vsel %vm481, %v376, %v565
        %v569 = vsel %vm481, 0, %v567
        %v570 = vcosq.f32.pop %v568
        %v571 = vsinq.f32.pop %v568
        %vm572 = vweird.f32 %v376
        %v573 = vand.u32 %v569, 3
        %vm574 = vcmp.lt.s32.totalorder %v573, 2
        %vm575 = vcmp.eq.s32.totalorder %v573, 0
        %v576 = vxor.u32 %v571, 2147483648
        %v577 = vsel %vm575, %v570, %v576
        %vm578 = vcmp.eq.s32.totalorder %v573, 2
        %v579 = vxor.u32 %v570, 2147483648
        %v580 = vsel %vm578, %v579, %v571
        %v581 = vsel %vm574, %v577, %v580
        %v582 = vsel %vm572, nan, %v581
        %v583 = vmul.f32 %v479, %v372
        %v584 = vmul.f32 %v582, %v374
        %v585 = vand.u32 2147483647, %v375
        %vm586 = vcmp.le.f32.partialorder %v585, 0.7853982
        %vm587 = vcmp.lt.s32.totalorder %v375, 0
        %v588 = vand.u32 %v375, 2139095040
        %v589 = vshrl.u32 %v588, 23
        %v590 = vsub.s32 %v589, 127
        %v591 = vand.u32 2147483647, %v375
        %v592 = vand.u32 %v591, 8388607
        %v593 = vor.u32 %v592, 8388608
        %v594 = vsub.s32 0, %v593
        %v595 = vadd.s32 %v590, 1
        %vm596 = vcmp.gt.s32.totalorder %v595, 0
        %v597 = vsel %vm596, %v595, 0
        %v598 = vshrl.u32 %v597, 5
        %v599 = vand.u32 %v597, 31
        %v600 = vsub.s32 32, %v599
        %v601 = vshrl.u32 683565275, %v600
        %v602 = vshll.u32 683565275, %v599
        %v603 = vshrl.u32 2475754826, %v600
        %v604 = vor.u32 %v602, %v603
        %v605 = vshll.u32 2475754826, %v599
        %v606 = vshrl.u32 2131351028, %v600
        %v607 = vor.u32 %v605, %v606
        %v608 = vshll.u32 2131351028, %v599
        %v609 = vshrl.u32 2102212464, %v600
        %v610 = vor.u32 %v608, %v609
        %v611 = vshll.u32 2102212464, %v599
        %v612 = vshrl.u32 920167782, %v600
        %v613 = vor.u32 %v611, %v612
        %v614 = vshll.u32 920167782, %v599
        %v615 = vshrl.u32 1326507024, %v600
        %v616 = vor.u32 %v614, %v615
        %vm617 = vcmp.lt.s32.totalorder %v598, 1
        %vm618 = vcmp.lt.s32.totalorder %v598, 2
        %vm619 = vcmp.lt.s32.totalorder %v598, 3
        %vm620 = vcmp.lt.s32.totalorder %v598, 4
        %v621 = vsel %vm617, %v601, %v604
        %v622 = vsel %vm620, %v610, 2102212464
        %v623 = vsel %vm619, %v607, %v622
        %v624 = vsel %vm618, %v621, %v623
        %v625 = vsel %vm617, %v604, %v607
        %v626 = vsel %vm620, %v613, 920167782
        %v627 = vsel %vm619, %v610, %v626
        %v628 = vsel %vm618, %v625, %v627
        %v629 = vsel %vm617, %v607, %v610
        %v630 = vsel %vm620, %v616, 1326507024
        %v631 = vsel %vm619, %v613, %v630
        %v632 = vsel %vm618, %v629, %v631
        %v633 = vshll.u32 %v593, 8
        %v634 = vmul.u32.u64.compose %v633, %v632
        %v635 = vextract.low.u32 %v634
        %v636 = vextract.high.u32 %v634
        %v637 = vmul.u32.u64.compose %v633, %v628
        %v638 = vextract.low.u32 %v637
        %v639 = vextract.high.u32 %v637
        %v640 = vmul.u32 %v633, %v624
        %v641 = vadd.s32 %v636, %v638
        %vm642 = vc.u32 %v636, %v638
        %v643 = vadd.s32 %v639, 1
        %v644 = vsel %vm642, %v643, %v639
        %v645 = vadd.s32 %v640, %v644
        %v646 = vadd.s32 %v645, 536870912
        %v647 = vshrl.u32 %v646, 30
        %v648 = vshll.u32 %v647, 30
        %v649 = vsub.s32 %v645, %v648
        %vm650 = vcmp.lt.s32.totalorder %v649, 0
        %v651 = vsub.s32 0, %v649
        %v652 = vsel %vm650, %v651, %v649
        %v653 = vclz %v652
        %v654 = vsub.s32 %v653, 2
        %vm655 = vcmp.gt.s32.totalorder 0, %v654
        %v656 = vsel %vm655, 0, %v654
        %v657 = vsub.s32 32, %v656
        %v658 = vshll.u32 %v649, %v656
        %v659 = vshrl.u32 %v641, %v657
        %v660 = vor.u32 %v658, %v659
        %v661 = vsub.s32 4294967266, %v656
        %v662 = vadd.s32 %v661, 127
        %v663 = vshll.u32 %v662, 23
        %v664 = vor.u32 4788187, %v663
        %v665 = vand.u32 2147483647, %v664
        %v667 = vcvt.s32.f32 %v660
        %v668 = vmul.f32 %v667, %v665
        %v669 = vxor.u32 %v668, 2147483648
        %v670 = vsel %vm587, %v669, %v668
        %v671 = vsub.s32 4, %v647
        %v672 = vsel %vm587, %v671, %v647
        %v673 = vsel %vm586, %v375, %v670
        %v674 = vsel %vm586, 0, %v672
        %v675 = vcosq.f32.pop %v673
        %v676 = vsinq.f32.pop %v673
        %vm677 = vweird.f32 %v375
        %v678 = vadd.s32 %v674, 3
        %v679 = vand.u32 %v678, 3
        %vm680 = vcmp.lt.s32.totalorder %v679, 2
        %vm681 = vcmp.eq.s32.totalorder %v679, 0
        %v682 = vxor.u32 %v676, 2147483648
        %v683 = vsel %vm681, %v675, %v682
        %vm684 = vcmp.eq.s32.totalorder %v679, 2
        %v685 = vxor.u32 %v675, 2147483648
        %v686 = vsel %vm684, %v685, %v676
        %v687 = vsel %vm680, %v683, %v686
        %v688 = vsel %vm677, nan, %v687
        %v689 = vand.u32 2147483647, %v376
        %vm690 = vcmp.le.f32.partialorder %v689, 0.7853982
        %vm691 = vcmp.lt.s32.totalorder %v376, 0
        %v692 = vand.u32 %v376, 2139095040
        %v693 = vshrl.u32 %v692, 23
        %v694 = vsub.s32 %v693, 127
        %v695 = vand.u32 2147483647, %v376
        %v696 = vand.u32 %v695, 8388607
        %v697 = vor.u32 %v696, 8388608
        %v698 = vsub.s32 0, %v697
        %v699 = vadd.s32 %v694, 1
        %vm700 = vcmp.gt.s32.totalorder %v699, 0
        %v701 = vsel %vm700, %v699, 0
        %v702 = vshrl.u32 %v701, 5
        %v703 = vand.u32 %v701, 31
        %v704 = vsub.s32 32, %v703
        %v705 = vshrl.u32 683565275, %v704
        %v706 = vshll.u32 683565275, %v703
        %v707 = vshrl.u32 2475754826, %v704
        %v708 = vor.u32 %v706, %v707
        %v709 = vshll.u32 2475754826, %v703
        %v710 = vshrl.u32 2131351028, %v704
        %v711 = vor.u32 %v709, %v710
        %v712 = vshll.u32 2131351028, %v703
        %v713 = vshrl.u32 2102212464, %v704
        %v714 = vor.u32 %v712, %v713
        %v715 = vshll.u32 2102212464, %v703
        %v716 = vshrl.u32 920167782, %v704
        %v717 = vor.u32 %v715, %v716
        %v718 = vshll.u32 920167782, %v703
        %v719 = vshrl.u32 1326507024, %v704
        %v720 = vor.u32 %v718, %v719
        %vm721 = vcmp.lt.s32.totalorder %v702, 1
        %vm722 = vcmp.lt.s32.totalorder %v702, 2
        %vm723 = vcmp.lt.s32.totalorder %v702, 3
        %vm724 = vcmp.lt.s32.totalorder %v702, 4
        %v725 = vsel %vm721, %v705, %v708
        %v726 = vsel %vm724, %v714, 2102212464
        %v727 = vsel %vm723, %v711, %v726
        %v728 = vsel %vm722, %v725, %v727
        %v729 = vsel %vm721, %v708, %v711
        %v730 = vsel %vm724, %v717, 920167782
        %v731 = vsel %vm723, %v714, %v730
        %v732 = vsel %vm722, %v729, %v731
        %v733 = vsel %vm721, %v711, %v714
        %v734 = vsel %vm724, %v720, 1326507024
        %v735 = vsel %vm723, %v717, %v734
        %v736 = vsel %vm722, %v733, %v735
        %v737 = vshll.u32 %v697, 8
        %v738 = vmul.u32.u64.compose %v737, %v736
        %v739 = vextract.low.u32 %v738
        %v740 = vextract.high.u32 %v738
        %v741 = vmul.u32.u64.compose %v737, %v732
        %v742 = vextract.low.u32 %v741
        %v743 = vextract.high.u32 %v741
        %v744 = vmul.u32 %v737, %v728
        %v745 = vadd.s32 %v740, %v742
        %vm746 = vc.u32 %v740, %v742
        %v747 = vadd.s32 %v743, 1
        %v748 = vsel %vm746, %v747, %v743
        %v749 = vadd.s32 %v744, %v748
        %v750 = vadd.s32 %v749, 536870912
        %v751 = vshrl.u32 %v750, 30
        %v752 = vshll.u32 %v751, 30
        %v753 = vsub.s32 %v749, %v752
        %vm754 = vcmp.lt.s32.totalorder %v753, 0
        %v755 = vsub.s32 0, %v753
        %v756 = vsel %vm754, %v755, %v753
        %v757 = vclz %v756
        %v758 = vsub.s32 %v757, 2
        %vm759 = vcmp.gt.s32.totalorder 0, %v758
        %v760 = vsel %vm759, 0, %v758
        %v761 = vsub.s32 32, %v760
        %v762 = vshll.u32 %v753, %v760
        %v763 = vshrl.u32 %v745, %v761
        %v764 = vor.u32 %v762, %v763
        %v765 = vsub.s32 4294967266, %v760
        %v766 = vadd.s32 %v765, 127
        %v767 = vshll.u32 %v766, 23
        %v768 = vor.u32 4788187, %v767
        %v769 = vand.u32 2147483647, %v768
        %v771 = vcvt.s32.f32 %v764
        %v772 = vmul.f32 %v771, %v769
        %v773 = vxor.u32 %v772, 2147483648
        %v774 = vsel %vm691, %v773, %v772
        %v775 = vsub.s32 4, %v751
        %v776 = vsel %vm691, %v775, %v751
        %v777 = vsel %vm690, %v376, %v774
        %v778 = vsel %vm690, 0, %v776
        %v779 = vcosq.f32.pop %v777
        %v780 = vsinq.f32.pop %v777
        %vm781 = vweird.f32 %v376
        %v782 = vadd.s32 %v778, 3
        %v783 = vand.u32 %v782, 3
        %vm784 = vcmp.lt.s32.totalorder %v783, 2
        %vm785 = vcmp.eq.s32.totalorder %v783, 0
        %v786 = vxor.u32 %v780, 2147483648
        %v787 = vsel %vm785, %v779, %v786
        %vm788 = vcmp.eq.s32.totalorder %v783, 2
        %v789 = vxor.u32 %v779, 2147483648
        %v790 = vsel %vm788, %v789, %v780
        %v791 = vsel %vm784, %v787, %v790
        %v792 = vsel %vm781, nan, %v791
        %v793 = vmul.f32 %v688, %v372
        %v794 = vmul.f32 %v792, %v374
        %v795 = vld [vmem:[%s3] sm:$0xff]
        %v796 = vld [vmem:[%s3 + $0x8] sm:$0xff]
        %v797 = vld [vmem:[%s3 + $0x10] sm:$0xff]
        %v798 = vld [vmem:[%s3 + $0x18] sm:$0xff]
        %v799 = vld [vmem:[%s3 + $0x20] sm:$0xff]
        %v800 = vld [vmem:[%s3 + $0x28] sm:$0xff]
        %v801 = vld [vmem:[%s3 + $0x30] sm:$0xff]
        %v802 = vld [vmem:[%s3 + $0x38] sm:$0xff]
        %v803 = vld [vmem:[%s4] sm:$0xff]
        %v804 = vld [vmem:[%s4 + $0x8] sm:$0xff]
        %v805 = vld [vmem:[%s4 + $0x10] sm:$0xff]
        %v806 = vld [vmem:[%s4 + $0x18] sm:$0xff]
        %v807 = vld [vmem:[%s4 + $0x20] sm:$0xff]
        %v808 = vld [vmem:[%s4 + $0x28] sm:$0xff]
        %v809 = vld [vmem:[%s4 + $0x30] sm:$0xff]
        %v810 = vld [vmem:[%s4 + $0x38] sm:$0xff]
        %812 = vset.pattern.permute.xlu0 0
        %813 = vperm.xlu0 %812, %v803
        %v814 = vpop.permute.xlu0 %813
        %817 = vset.pattern.permute.xlu0 0
        %818 = vperm.xlu0 %817, %v804
        %v819 = vpop.permute.xlu0 %818
        %822 = vset.pattern.permute.xlu0 0
        %823 = vperm.xlu0 %822, %v805
        %v824 = vpop.permute.xlu0 %823
        %827 = vset.pattern.permute.xlu0 0
        %828 = vperm.xlu0 %827, %v806
        %v829 = vpop.permute.xlu0 %828
        %832 = vset.pattern.permute.xlu0 0
        %833 = vperm.xlu0 %832, %v807
        %v834 = vpop.permute.xlu0 %833
        %837 = vset.pattern.permute.xlu0 0
        %838 = vperm.xlu0 %837, %v808
        %v839 = vpop.permute.xlu0 %838
        %842 = vset.pattern.permute.xlu0 0
        %843 = vperm.xlu0 %842, %v809
        %v844 = vpop.permute.xlu0 %843
        %847 = vset.pattern.permute.xlu0 0
        %848 = vperm.xlu0 %847, %v810
        %v849 = vpop.permute.xlu0 %848
        %vm851 = vcmask 261120
        %v853 = vsel %vm851, %v795, 0
        %v856 = vsel %vm851, %v796, 0
        %v859 = vsel %vm851, %v797, 0
        %v862 = vsel %vm851, %v798, 0
        %v865 = vsel %vm851, %v799, 0
        %v868 = vsel %vm851, %v800, 0
        %v871 = vsel %vm851, %v801, 0
        %v874 = vsel %vm851, %v802, 0
        %876 = vmatprep.subr.mxu0 0.0
        %877 = vmatpush1.msra.mxu0 %v583
        %878 = vmatprep.subr.mxu0 0.0
        %879 = vmatpush1.msra.mxu0 %v584
        %880 = vmatprep.subr.mxu0 0.0
        %881 = vmatpush1.msra.mxu0 %v793
        %882 = vmatprep.subr.mxu0 0.0
        %883 = vmatpush1.msra.mxu0 %v794
        %884 = vmatprep.subr.mxu0 0.0
        %885 = vmatpush1.msra.mxu0 0.0
        %886 = vmatprep.subr.mxu0 0.0
        %887 = vmatpush1.msra.mxu0 0.0
        %888 = vmatprep.subr.mxu0 0.0
        %889 = vmatpush1.msra.mxu0 0.0
        %890 = vmatprep.subr.mxu0 0.0
        %891 = vmatpush1.msra.mxu0 0.0
        %892 = vmatprep.subr.mxu0 0.0
        %893 = vmatpush1.msra.mxu0 0.0
        %894 = vmatprep.subr.mxu0 0.0
        %895 = vmatpush1.msra.mxu0 0.0
        %896 = vmatprep.subr.mxu0 0.0
        %897 = vmatpush1.msra.mxu0 0.0
        %898 = vmatprep.subr.mxu0 0.0
        %899 = vmatpush1.msra.mxu0 0.0
        %900 = vmatprep.subr.mxu0 0.0
        %901 = vmatpush1.msra.mxu0 0.0
        %902 = vmatprep.subr.mxu0 0.0
        %903 = vmatpush1.msra.mxu0 0.0
        %904 = vmatprep.subr.mxu0 0.0
        %905 = vmatpush1.msra.mxu0 0.0
        %906 = vmatprep.subr.mxu0 0.0
        %907 = vmatpush1.msra.mxu0 0.0
        %908 = vmatprep.subr.mxu0 0.0
        %909 = vmatpush1.msra.mxu0 0.0
        %910 = vmatprep.subr.mxu0 0.0
        %911 = vmatpush1.msra.mxu0 0.0
        %912 = vmatprep.subr.mxu0 0.0
        %913 = vmatpush1.msra.mxu0 0.0
        %914 = vmatprep.subr.mxu0 0.0
        %915 = vmatpush1.msra.mxu0 0.0
        %916 = vmatprep.subr.mxu0 0.0
        %917 = vmatpush1.msra.mxu0 0.0
        %918 = vmatprep.subr.mxu0 0.0
        %919 = vmatpush1.msra.mxu0 0.0
        %920 = vmatprep.subr.mxu0 0.0
        %921 = vmatpush1.msra.mxu0 0.0
        %922 = vmatprep.subr.mxu0 0.0
        %923 = vmatpush1.msra.mxu0 0.0
        %924 = vmatprep.subr.mxu0 0.0
        %925 = vmatpush1.msra.mxu0 0.0
        %926 = vmatprep.subr.mxu0 0.0
        %927 = vmatpush1.msra.mxu0 0.0
        %928 = vmatprep.subr.mxu0 0.0
        %929 = vmatpush1.msra.mxu0 0.0
        %930 = vmatprep.subr.mxu0 0.0
        %931 = vmatpush1.msra.mxu0 0.0
        %932 = vmatprep.subr.mxu0 0.0
        %933 = vmatpush1.msra.mxu0 0.0
        %934 = vmatprep.subr.mxu0 0.0
        %935 = vmatpush1.msra.mxu0 0.0
        %936 = vmatprep.subr.mxu0 0.0
        %937 = vmatpush1.msra.mxu0 0.0
        %938 = vmatprep.subr.mxu0 0.0
        %939 = vmatpush1.msra.mxu0 0.0
        %940 = vmatprep.mubr.f32.mxu0 0.0
        %941 = vmatmul.mubr.f32.gmra.mrb[0].mxu0 %v853
        %v942 = vpop.f32.mrb[0].mxu0
        %v943 = vadd.f32 %v814, %v942
        %v944 = vpop.f32.mrb[0].mxu0
        %945 = vmatprep.mubr.f32.mxu0 0.0
        %946 = vmatmul.mubr.f32.gmra.mrb[0].mxu0 %v856
        %v947 = vpop.f32.mrb[0].mxu0
        %v948 = vadd.f32 %v819, %v947
        %v949 = vpop.f32.mrb[0].mxu0
        %950 = vmatprep.mubr.f32.mxu0 0.0
        %951 = vmatmul.mubr.f32.gmra.mrb[0].mxu0 %v859
        %v952 = vpop.f32.mrb[0].mxu0
        %v953 = vadd.f32 %v824, %v952
        %v954 = vpop.f32.mrb[0].mxu0
        %955 = vmatprep.mubr.f32.mxu0 0.0
        %956 = vmatmul.mubr.f32.gmra.mrb[0].mxu0 %v862
        %v957 = vpop.f32.mrb[0].mxu0
        %v958 = vadd.f32 %v829, %v957
        %v959 = vpop.f32.mrb[0].mxu0
        %960 = vmatprep.mubr.f32.mxu0 0.0
        %961 = vmatmul.mubr.f32.gmra.mrb[0].mxu0 %v865
        %v962 = vpop.f32.mrb[0].mxu0
        %v963 = vadd.f32 %v834, %v962
        %v964 = vpop.f32.mrb[0].mxu0
        %965 = vmatprep.mubr.f32.mxu0 0.0
        %966 = vmatmul.mubr.f32.gmra.mrb[0].mxu0 %v868
        %v967 = vpop.f32.mrb[0].mxu0
        %v968 = vadd.f32 %v839, %v967
        %v969 = vpop.f32.mrb[0].mxu0
        %970 = vmatprep.mubr.f32.mxu0 0.0
        %971 = vmatmul.mubr.f32.gmra.mrb[0].mxu0 %v871
        %v972 = vpop.f32.mrb[0].mxu0
        %v973 = vadd.f32 %v844, %v972
        %v974 = vpop.f32.mrb[0].mxu0
        %975 = vmatprep.mubr.f32.mxu0 0.0
        %976 = vmatmul.mubr.f32.gmra.mrb[0].mxu0 %v874
        %v977 = vpop.f32.mrb[0].mxu0
        %v978 = vadd.f32 %v849, %v977
        %v979 = vpop.f32.mrb[0].mxu0
        %980 = vdwg.mxu0
        %v981 = vmul.f32 %v943, %v943
        %v982 = vmul.f32 %v948, %v948
        %v983 = vmul.f32 %v953, %v953
        %v984 = vmul.f32 %v958, %v958
        %v985 = vmul.f32 %v963, %v963
        %v986 = vmul.f32 %v968, %v968
        %v987 = vmul.f32 %v973, %v973
        %v988 = vmul.f32 %v978, %v978
        %v989 = vadd.f32 %v981, %v983
        %v990 = vadd.f32 %v982, %v984
        %v991 = vadd.f32 %v989, %v985
        %v992 = vadd.f32 %v990, %v986
        %v993 = vadd.f32 %v991, %v987
        %v994 = vadd.f32 %v992, %v988
        %v995 = vmul.f32 %v993, -100.0
        %v996 = vmul.f32 %v994, -100.0
        %v997 = vmul.f32 %v953, 10.0
        %v998 = vmul.f32 %v958, 10.0
        %v999 = vsub.f32 %v995, %v997
        %v1000 = vsub.f32 %v996, %v998
        %v1001 = vmul.f32 %v999, 1.442695
        %v1002 = vpow.pop %v1001
        %v1003 = vmul.f32 %v1000, 1.442695
        %v1004 = vpow.pop %v1003
        %v1005 = vmul.f32 %v943, 10.0
        %v1006 = vmul.f32 %v948, 10.0
        %v1007 = vand.u32 2147483647, %v1005
        %vm1008 = vcmp.le.f32.partialorder %v1007, 0.7853982
        %vm1009 = vcmp.lt.s32.totalorder %v1005, 0
        %v1010 = vand.u32 %v1005, 2139095040
        %v1011 = vshrl.u32 %v1010, 23
        %v1012 = vsub.s32 %v1011, 127
        %v1013 = vand.u32 2147483647, %v1005
        %v1014 = vand.u32 %v1013, 8388607
        %v1015 = vor.u32 %v1014, 8388608
        %v1016 = vsub.s32 0, %v1015
        %v1017 = vadd.s32 %v1012, 1
        %vm1018 = vcmp.gt.s32.totalorder %v1017, 0
        %v1019 = vsel %vm1018, %v1017, 0
        %v1020 = vshrl.u32 %v1019, 5
        %v1021 = vand.u32 %v1019, 31
        %v1022 = vsub.s32 32, %v1021
        %v1023 = vshrl.u32 683565275, %v1022
        %v1024 = vshll.u32 683565275, %v1021
        %v1025 = vshrl.u32 2475754826, %v1022
        %v1026 = vor.u32 %v1024, %v1025
        %v1027 = vshll.u32 2475754826, %v1021
        %v1028 = vshrl.u32 2131351028, %v1022
        %v1029 = vor.u32 %v1027, %v1028
        %v1030 = vshll.u32 2131351028, %v1021
        %v1031 = vshrl.u32 2102212464, %v1022
        %v1032 = vor.u32 %v1030, %v1031
        %v1033 = vshll.u32 2102212464, %v1021
        %v1034 = vshrl.u32 920167782, %v1022
        %v1035 = vor.u32 %v1033, %v1034
        %v1036 = vshll.u32 920167782, %v1021
        %v1037 = vshrl.u32 1326507024, %v1022
        %v1038 = vor.u32 %v1036, %v1037
        %vm1039 = vcmp.lt.s32.totalorder %v1020, 1
        %vm1040 = vcmp.lt.s32.totalorder %v1020, 2
        %vm1041 = vcmp.lt.s32.totalorder %v1020, 3
        %vm1042 = vcmp.lt.s32.totalorder %v1020, 4
        %v1043 = vsel %vm1039, %v1023, %v1026
        %v1044 = vsel %vm1042, %v1032, 2102212464
        %v1045 = vsel %vm1041, %v1029, %v1044
        %v1046 = vsel %vm1040, %v1043, %v1045
        %v1047 = vsel %vm1039, %v1026, %v1029
        %v1048 = vsel %vm1042, %v1035, 920167782
        %v1049 = vsel %vm1041, %v1032, %v1048
        %v1050 = vsel %vm1040, %v1047, %v1049
        %v1051 = vsel %vm1039, %v1029, %v1032
        %v1052 = vsel %vm1042, %v1038, 1326507024
        %v1053 = vsel %vm1041, %v1035, %v1052
        %v1054 = vsel %vm1040, %v1051, %v1053
        %v1055 = vshll.u32 %v1015, 8
        %v1056 = vmul.u32.u64.compose %v1055, %v1054
        %v1057 = vextract.low.u32 %v1056
        %v1058 = vextract.high.u32 %v1056
        %v1059 = vmul.u32.u64.compose %v1055, %v1050
        %v1060 = vextract.low.u32 %v1059
        %v1061 = vextract.high.u32 %v1059
        %v1062 = vmul.u32 %v1055, %v1046
        %v1063 = vadd.s32 %v1058, %v1060
        %vm1064 = vc.u32 %v1058, %v1060
        %v1065 = vadd.s32 %v1061, 1
        %v1066 = vsel %vm1064, %v1065, %v1061
        %v1067 = vadd.s32 %v1062, %v1066
        %v1068 = vadd.s32 %v1067, 536870912
        %v1069 = vshrl.u32 %v1068, 30
        %v1070 = vshll.u32 %v1069, 30
        %v1071 = vsub.s32 %v1067, %v1070
        %vm1072 = vcmp.lt.s32.totalorder %v1071, 0
        %v1073 = vsub.s32 0, %v1071
        %v1074 = vsel %vm1072, %v1073, %v1071
        %v1075 = vclz %v1074
        %v1076 = vsub.s32 %v1075, 2
        %vm1077 = vcmp.gt.s32.totalorder 0, %v1076
        %v1078 = vsel %vm1077, 0, %v1076
        %v1079 = vsub.s32 32, %v1078
        %v1080 = vshll.u32 %v1071, %v1078
        %v1081 = vshrl.u32 %v1063, %v1079
        %v1082 = vor.u32 %v1080, %v1081
        %v1083 = vsub.s32 4294967266, %v1078
        %v1084 = vadd.s32 %v1083, 127
        %v1085 = vshll.u32 %v1084, 23
        %v1086 = vor.u32 4788187, %v1085
        %v1087 = vand.u32 2147483647, %v1086
        %v1089 = vcvt.s32.f32 %v1082
        %v1090 = vmul.f32 %v1089, %v1087
        %v1091 = vxor.u32 %v1090, 2147483648
        %v1092 = vsel %vm1009, %v1091, %v1090
        %v1093 = vsub.s32 4, %v1069
        %v1094 = vsel %vm1009, %v1093, %v1069
        %v1095 = vsel %vm1008, %v1005, %v1092
        %v1096 = vsel %vm1008, 0, %v1094
        %v1097 = vcosq.f32.pop %v1095
        %v1098 = vsinq.f32.pop %v1095
        %vm1099 = vweird.f32 %v1005
        %v1100 = vand.u32 %v1096, 3
        %vm1101 = vcmp.lt.s32.totalorder %v1100, 2
        %vm1102 = vcmp.eq.s32.totalorder %v1100, 0
        %v1103 = vxor.u32 %v1098, 2147483648
        %v1104 = vsel %vm1102, %v1097, %v1103
        %vm1105 = vcmp.eq.s32.totalorder %v1100, 2
        %v1106 = vxor.u32 %v1097, 2147483648
        %v1107 = vsel %vm1105, %v1106, %v1098
        %v1108 = vsel %vm1101, %v1104, %v1107
        %v1109 = vsel %vm1099, nan, %v1108
        %v1110 = vand.u32 2147483647, %v1006
        %vm1111 = vcmp.le.f32.partialorder %v1110, 0.7853982
        %vm1112 = vcmp.lt.s32.totalorder %v1006, 0
        %v1113 = vand.u32 %v1006, 2139095040
        %v1114 = vshrl.u32 %v1113, 23
        %v1115 = vsub.s32 %v1114, 127
        %v1116 = vand.u32 2147483647, %v1006
        %v1117 = vand.u32 %v1116, 8388607
        %v1118 = vor.u32 %v1117, 8388608
        %v1119 = vsub.s32 0, %v1118
        %v1120 = vadd.s32 %v1115, 1
        %vm1121 = vcmp.gt.s32.totalorder %v1120, 0
        %v1122 = vsel %vm1121, %v1120, 0
        %v1123 = vshrl.u32 %v1122, 5
        %v1124 = vand.u32 %v1122, 31
        %v1125 = vsub.s32 32, %v1124
        %v1126 = vshrl.u32 683565275, %v1125
        %v1127 = vshll.u32 683565275, %v1124
        %v1128 = vshrl.u32 2475754826, %v1125
        %v1129 = vor.u32 %v1127, %v1128
        %v1130 = vshll.u32 2475754826, %v1124
        %v1131 = vshrl.u32 2131351028, %v1125
        %v1132 = vor.u32 %v1130, %v1131
        %v1133 = vshll.u32 2131351028, %v1124
        %v1134 = vshrl.u32 2102212464, %v1125
        %v1135 = vor.u32 %v1133, %v1134
        %v1136 = vshll.u32 2102212464, %v1124
        %v1137 = vshrl.u32 920167782, %v1125
        %v1138 = vor.u32 %v1136, %v1137
        %v1139 = vshll.u32 920167782, %v1124
        %v1140 = vshrl.u32 1326507024, %v1125
        %v1141 = vor.u32 %v1139, %v1140
        %vm1142 = vcmp.lt.s32.totalorder %v1123, 1
        %vm1143 = vcmp.lt.s32.totalorder %v1123, 2
        %vm1144 = vcmp.lt.s32.totalorder %v1123, 3
        %vm1145 = vcmp.lt.s32.totalorder %v1123, 4
        %v1146 = vsel %vm1142, %v1126, %v1129
        %v1147 = vsel %vm1145, %v1135, 2102212464
        %v1148 = vsel %vm1144, %v1132, %v1147
        %v1149 = vsel %vm1143, %v1146, %v1148
        %v1150 = vsel %vm1142, %v1129, %v1132
        %v1151 = vsel %vm1145, %v1138, 920167782
        %v1152 = vsel %vm1144, %v1135, %v1151
        %v1153 = vsel %vm1143, %v1150, %v1152
        %v1154 = vsel %vm1142, %v1132, %v1135
        %v1155 = vsel %vm1145, %v1141, 1326507024
        %v1156 = vsel %vm1144, %v1138, %v1155
        %v1157 = vsel %vm1143, %v1154, %v1156
        %v1158 = vshll.u32 %v1118, 8
        %v1159 = vmul.u32.u64.compose %v1158, %v1157
        %v1160 = vextract.low.u32 %v1159
        %v1161 = vextract.high.u32 %v1159
        %v1162 = vmul.u32.u64.compose %v1158, %v1153
        %v1163 = vextract.low.u32 %v1162
        %v1164 = vextract.high.u32 %v1162
        %v1165 = vmul.u32 %v1158, %v1149
        %v1166 = vadd.s32 %v1161, %v1163
        %vm1167 = vc.u32 %v1161, %v1163
        %v1168 = vadd.s32 %v1164, 1
        %v1169 = vsel %vm1167, %v1168, %v1164
        %v1170 = vadd.s32 %v1165, %v1169
        %v1171 = vadd.s32 %v1170, 536870912
        %v1172 = vshrl.u32 %v1171, 30
        %v1173 = vshll.u32 %v1172, 30
        %v1174 = vsub.s32 %v1170, %v1173
        %vm1175 = vcmp.lt.s32.totalorder %v1174, 0
        %v1176 = vsub.s32 0, %v1174
        %v1177 = vsel %vm1175, %v1176, %v1174
        %v1178 = vclz %v1177
        %v1179 = vsub.s32 %v1178, 2
        %vm1180 = vcmp.gt.s32.totalorder 0, %v1179
        %v1181 = vsel %vm1180, 0, %v1179
        %v1182 = vsub.s32 32, %v1181
        %v1183 = vshll.u32 %v1174, %v1181
        %v1184 = vshrl.u32 %v1166, %v1182
        %v1185 = vor.u32 %v1183, %v1184
        %v1186 = vsub.s32 4294967266, %v1181
        %v1187 = vadd.s32 %v1186, 127
        %v1188 = vshll.u32 %v1187, 23
        %v1189 = vor.u32 4788187, %v1188
        %v1190 = vand.u32 2147483647, %v1189
        %v1192 = vcvt.s32.f32 %v1185
        %v1193 = vmul.f32 %v1192, %v1190
        %v1194 = vxor.u32 %v1193, 2147483648
        %v1195 = vsel %vm1112, %v1194, %v1193
        %v1196 = vsub.s32 4, %v1172
        %v1197 = vsel %vm1112, %v1196, %v1172
        %v1198 = vsel %vm1111, %v1006, %v1195
        %v1199 = vsel %vm1111, 0, %v1197
        %v1200 = vcosq.f32.pop %v1198
        %v1201 = vsinq.f32.pop %v1198
        %vm1202 = vweird.f32 %v1006
        %v1203 = vand.u32 %v1199, 3
        %vm1204 = vcmp.lt.s32.totalorder %v1203, 2
        %vm1205 = vcmp.eq.s32.totalorder %v1203, 0
        %v1206 = vxor.u32 %v1201, 2147483648
        %v1207 = vsel %vm1205, %v1200, %v1206
        %vm1208 = vcmp.eq.s32.totalorder %v1203, 2
        %v1209 = vxor.u32 %v1200, 2147483648
        %v1210 = vsel %vm1208, %v1209, %v1201
        %v1211 = vsel %vm1204, %v1207, %v1210
        %v1212 = vsel %vm1202, nan, %v1211
        %v1213 = vmul.f32 %v1109, %v1002
        %v1214 = vmul.f32 %v1212, %v1004
        %v1215 = vand.u32 2147483647, %v1005
        %vm1216 = vcmp.le.f32.partialorder %v1215, 0.7853982
        %vm1217 = vcmp.lt.s32.totalorder %v1005, 0
        %v1218 = vand.u32 %v1005, 2139095040
        %v1219 = vshrl.u32 %v1218, 23
        %v1220 = vsub.s32 %v1219, 127
        %v1221 = vand.u32 2147483647, %v1005
        %v1222 = vand.u32 %v1221, 8388607
        %v1223 = vor.u32 %v1222, 8388608
        %v1224 = vsub.s32 0, %v1223
        %v1225 = vadd.s32 %v1220, 1
        %vm1226 = vcmp.gt.s32.totalorder %v1225, 0
        %v1227 = vsel %vm1226, %v1225, 0
        %v1228 = vshrl.u32 %v1227, 5
        %v1229 = vand.u32 %v1227, 31
        %v1230 = vsub.s32 32, %v1229
        %v1231 = vshrl.u32 683565275, %v1230
        %v1232 = vshll.u32 683565275, %v1229
        %v1233 = vshrl.u32 2475754826, %v1230
        %v1234 = vor.u32 %v1232, %v1233
        %v1235 = vshll.u32 2475754826, %v1229
        %v1236 = vshrl.u32 2131351028, %v1230
        %v1237 = vor.u32 %v1235, %v1236
        %v1238 = vshll.u32 2131351028, %v1229
        %v1239 = vshrl.u32 2102212464, %v1230
        %v1240 = vor.u32 %v1238, %v1239
        %v1241 = vshll.u32 2102212464, %v1229
        %v1242 = vshrl.u32 920167782, %v1230
        %v1243 = vor.u32 %v1241, %v1242
        %v1244 = vshll.u32 920167782, %v1229
        %v1245 = vshrl.u32 1326507024, %v1230
        %v1246 = vor.u32 %v1244, %v1245
        %vm1247 = vcmp.lt.s32.totalorder %v1228, 1
        %vm1248 = vcmp.lt.s32.totalorder %v1228, 2
        %vm1249 = vcmp.lt.s32.totalorder %v1228, 3
        %vm1250 = vcmp.lt.s32.totalorder %v1228, 4
        %v1251 = vsel %vm1247, %v1231, %v1234
        %v1252 = vsel %vm1250, %v1240, 2102212464
        %v1253 = vsel %vm1249, %v1237, %v1252
        %v1254 = vsel %vm1248, %v1251, %v1253
        %v1255 = vsel %vm1247, %v1234, %v1237
        %v1256 = vsel %vm1250, %v1243, 920167782
        %v1257 = vsel %vm1249, %v1240, %v1256
        %v1258 = vsel %vm1248, %v1255, %v1257
        %v1259 = vsel %vm1247, %v1237, %v1240
        %v1260 = vsel %vm1250, %v1246, 1326507024
        %v1261 = vsel %vm1249, %v1243, %v1260
        %v1262 = vsel %vm1248, %v1259, %v1261
        %v1263 = vshll.u32 %v1223, 8
        %v1264 = vmul.u32.u64.compose %v1263, %v1262
        %v1265 = vextract.low.u32 %v1264
        %v1266 = vextract.high.u32 %v1264
        %v1267 = vmul.u32.u64.compose %v1263, %v1258
        %v1268 = vextract.low.u32 %v1267
        %v1269 = vextract.high.u32 %v1267
        %v1270 = vmul.u32 %v1263, %v1254
        %v1271 = vadd.s32 %v1266, %v1268
        %vm1272 = vc.u32 %v1266, %v1268
        %v1273 = vadd.s32 %v1269, 1
        %v1274 = vsel %vm1272, %v1273, %v1269
        %v1275 = vadd.s32 %v1270, %v1274
        %v1276 = vadd.s32 %v1275, 536870912
        %v1277 = vshrl.u32 %v1276, 30
        %v1278 = vshll.u32 %v1277, 30
        %v1279 = vsub.s32 %v1275, %v1278
        %vm1280 = vcmp.lt.s32.totalorder %v1279, 0
        %v1281 = vsub.s32 0, %v1279
        %v1282 = vsel %vm1280, %v1281, %v1279
        %v1283 = vclz %v1282
        %v1284 = vsub.s32 %v1283, 2
        %vm1285 = vcmp.gt.s32.totalorder 0, %v1284
        %v1286 = vsel %vm1285, 0, %v1284
        %v1287 = vsub.s32 32, %v1286
        %v1288 = vshll.u32 %v1279, %v1286
        %v1289 = vshrl.u32 %v1271, %v1287
        %v1290 = vor.u32 %v1288, %v1289
        %v1291 = vsub.s32 4294967266, %v1286
        %v1292 = vadd.s32 %v1291, 127
        %v1293 = vshll.u32 %v1292, 23
        %v1294 = vor.u32 4788187, %v1293
        %v1295 = vand.u32 2147483647, %v1294
        %v1297 = vcvt.s32.f32 %v1290
        %v1298 = vmul.f32 %v1297, %v1295
        %v1299 = vxor.u32 %v1298, 2147483648
        %v1300 = vsel %vm1217, %v1299, %v1298
        %v1301 = vsub.s32 4, %v1277
        %v1302 = vsel %vm1217, %v1301, %v1277
        %v1303 = vsel %vm1216, %v1005, %v1300
        %v1304 = vsel %vm1216, 0, %v1302
        %v1305 = vcosq.f32.pop %v1303
        %v1306 = vsinq.f32.pop %v1303
        %vm1307 = vweird.f32 %v1005
        %v1308 = vadd.s32 %v1304, 3
        %v1309 = vand.u32 %v1308, 3
        %vm1310 = vcmp.lt.s32.totalorder %v1309, 2
        %vm1311 = vcmp.eq.s32.totalorder %v1309, 0
        %v1312 = vxor.u32 %v1306, 2147483648
        %v1313 = vsel %vm1311, %v1305, %v1312
        %vm1314 = vcmp.eq.s32.totalorder %v1309, 2
        %v1315 = vxor.u32 %v1305, 2147483648
        %v1316 = vsel %vm1314, %v1315, %v1306
        %v1317 = vsel %vm1310, %v1313, %v1316
        %v1318 = vsel %vm1307, nan, %v1317
        %v1319 = vand.u32 2147483647, %v1006
        %vm1320 = vcmp.le.f32.partialorder %v1319, 0.7853982
        %vm1321 = vcmp.lt.s32.totalorder %v1006, 0
        %v1322 = vand.u32 %v1006, 2139095040
        %v1323 = vshrl.u32 %v1322, 23
        %v1324 = vsub.s32 %v1323, 127
        %v1325 = vand.u32 2147483647, %v1006
        %v1326 = vand.u32 %v1325, 8388607
        %v1327 = vor.u32 %v1326, 8388608
        %v1328 = vsub.s32 0, %v1327
        %v1329 = vadd.s32 %v1324, 1
        %vm1330 = vcmp.gt.s32.totalorder %v1329, 0
        %v1331 = vsel %vm1330, %v1329, 0
        %v1332 = vshrl.u32 %v1331, 5
        %v1333 = vand.u32 %v1331, 31
        %v1334 = vsub.s32 32, %v1333
        %v1335 = vshrl.u32 683565275, %v1334
        %v1336 = vshll.u32 683565275, %v1333
        %v1337 = vshrl.u32 2475754826, %v1334
        %v1338 = vor.u32 %v1336, %v1337
        %v1339 = vshll.u32 2475754826, %v1333
        %v1340 = vshrl.u32 2131351028, %v1334
        %v1341 = vor.u32 %v1339, %v1340
        %v1342 = vshll.u32 2131351028, %v1333
        %v1343 = vshrl.u32 2102212464, %v1334
        %v1344 = vor.u32 %v1342, %v1343
        %v1345 = vshll.u32 2102212464, %v1333
        %v1346 = vshrl.u32 920167782, %v1334
        %v1347 = vor.u32 %v1345, %v1346
        %v1348 = vshll.u32 920167782, %v1333
        %v1349 = vshrl.u32 1326507024, %v1334
        %v1350 = vor.u32 %v1348, %v1349
        %vm1351 = vcmp.lt.s32.totalorder %v1332, 1
        %vm1352 = vcmp.lt.s32.totalorder %v1332, 2
        %vm1353 = vcmp.lt.s32.totalorder %v1332, 3
        %vm1354 = vcmp.lt.s32.totalorder %v1332, 4
        %v1355 = vsel %vm1351, %v1335, %v1338
        %v1356 = vsel %vm1354, %v1344, 2102212464
        %v1357 = vsel %vm1353, %v1341, %v1356
        %v1358 = vsel %vm1352, %v1355, %v1357
        %v1359 = vsel %vm1351, %v1338, %v1341
        %v1360 = vsel %vm1354, %v1347, 920167782
        %v1361 = vsel %vm1353, %v1344, %v1360
        %v1362 = vsel %vm1352, %v1359, %v1361
        %v1363 = vsel %vm1351, %v1341, %v1344
        %v1364 = vsel %vm1354, %v1350, 1326507024
        %v1365 = vsel %vm1353, %v1347, %v1364
        %v1366 = vsel %vm1352, %v1363, %v1365
        %v1367 = vshll.u32 %v1327, 8
        %v1368 = vmul.u32.u64.compose %v1367, %v1366
        %v1369 = vextract.low.u32 %v1368
        %v1370 = vextract.high.u32 %v1368
        %v1371 = vmul.u32.u64.compose %v1367, %v1362
        %v1372 = vextract.low.u32 %v1371
        %v1373 = vextract.high.u32 %v1371
        %v1374 = vmul.u32 %v1367, %v1358
        %v1375 = vadd.s32 %v1370, %v1372
        %vm1376 = vc.u32 %v1370, %v1372
        %v1377 = vadd.s32 %v1373, 1
        %v1378 = vsel %vm1376, %v1377, %v1373
        %v1379 = vadd.s32 %v1374, %v1378
        %v1380 = vadd.s32 %v1379, 536870912
        %v1381 = vshrl.u32 %v1380, 30
        %v1382 = vshll.u32 %v1381, 30
        %v1383 = vsub.s32 %v1379, %v1382
        %vm1384 = vcmp.lt.s32.totalorder %v1383, 0
        %v1385 = vsub.s32 0, %v1383
        %v1386 = vsel %vm1384, %v1385, %v1383
        %v1387 = vclz %v1386
        %v1388 = vsub.s32 %v1387, 2
        %vm1389 = vcmp.gt.s32.totalorder 0, %v1388
        %v1390 = vsel %vm1389, 0, %v1388
        %v1391 = vsub.s32 32, %v1390
        %v1392 = vshll.u32 %v1383, %v1390
        %v1393 = vshrl.u32 %v1375, %v1391
        %v1394 = vor.u32 %v1392, %v1393
        %v1395 = vsub.s32 4294967266, %v1390
        %v1396 = vadd.s32 %v1395, 127
        %v1397 = vshll.u32 %v1396, 23
        %v1398 = vor.u32 4788187, %v1397
        %v1399 = vand.u32 2147483647, %v1398
        %v1401 = vcvt.s32.f32 %v1394
        %v1402 = vmul.f32 %v1401, %v1399
        %v1403 = vxor.u32 %v1402, 2147483648
        %v1404 = vsel %vm1321, %v1403, %v1402
        %v1405 = vsub.s32 4, %v1381
        %v1406 = vsel %vm1321, %v1405, %v1381
        %v1407 = vsel %vm1320, %v1006, %v1404
        %v1408 = vsel %vm1320, 0, %v1406
        %v1409 = vcosq.f32.pop %v1407
        %v1410 = vsinq.f32.pop %v1407
        %vm1411 = vweird.f32 %v1006
        %v1412 = vadd.s32 %v1408, 3
        %v1413 = vand.u32 %v1412, 3
        %vm1414 = vcmp.lt.s32.totalorder %v1413, 2
        %vm1415 = vcmp.eq.s32.totalorder %v1413, 0
        %v1416 = vxor.u32 %v1410, 2147483648
        %v1417 = vsel %vm1415, %v1409, %v1416
        %vm1418 = vcmp.eq.s32.totalorder %v1413, 2
        %v1419 = vxor.u32 %v1409, 2147483648
        %v1420 = vsel %vm1418, %v1419, %v1410
        %v1421 = vsel %vm1414, %v1417, %v1420
        %v1422 = vsel %vm1411, nan, %v1421
        %v1423 = vmul.f32 %v1318, %v1002
        %v1424 = vmul.f32 %v1422, %v1004
        %s1425 = scalar_lea.vmem %s3, 64
        %v1426 = vld [vmem:[%s1425] sm:$0xff]
        %v1427 = vld [vmem:[%s1425 + $0x8] sm:$0xff]
        %v1428 = vld [vmem:[%s1425 + $0x10] sm:$0xff]
        %v1429 = vld [vmem:[%s1425 + $0x18] sm:$0xff]
        %v1430 = vld [vmem:[%s1425 + $0x20] sm:$0xff]
        %v1431 = vld [vmem:[%s1425 + $0x28] sm:$0xff]
        %v1432 = vld [vmem:[%s1425 + $0x30] sm:$0xff]
        %v1433 = vld [vmem:[%s1425 + $0x38] sm:$0xff]
        %s1434 = scalar_lea.vmem %s4, 64
        %v1435 = vld [vmem:[%s1434] sm:$0xff]
        %v1436 = vld [vmem:[%s1434 + $0x8] sm:$0xff]
        %v1437 = vld [vmem:[%s1434 + $0x10] sm:$0xff]
        %v1438 = vld [vmem:[%s1434 + $0x18] sm:$0xff]
        %v1439 = vld [vmem:[%s1434 + $0x20] sm:$0xff]
        %v1440 = vld [vmem:[%s1434 + $0x28] sm:$0xff]
        %v1441 = vld [vmem:[%s1434 + $0x30] sm:$0xff]
        %v1442 = vld [vmem:[%s1434 + $0x38] sm:$0xff]
        %1444 = vset.pattern.permute.xlu0 0
        %1445 = vperm.xlu0 %1444, %v1435
        %v1446 = vpop.permute.xlu0 %1445
        %1449 = vset.pattern.permute.xlu0 0
        %1450 = vperm.xlu0 %1449, %v1436
        %v1451 = vpop.permute.xlu0 %1450
        %1454 = vset.pattern.permute.xlu0 0
        %1455 = vperm.xlu0 %1454, %v1437
        %v1456 = vpop.permute.xlu0 %1455
        %1459 = vset.pattern.permute.xlu0 0
        %1460 = vperm.xlu0 %1459, %v1438
        %v1461 = vpop.permute.xlu0 %1460
        %1464 = vset.pattern.permute.xlu0 0
        %1465 = vperm.xlu0 %1464, %v1439
        %v1466 = vpop.permute.xlu0 %1465
        %1469 = vset.pattern.permute.xlu0 0
        %1470 = vperm.xlu0 %1469, %v1440
        %v1471 = vpop.permute.xlu0 %1470
        %1474 = vset.pattern.permute.xlu0 0
        %1475 = vperm.xlu0 %1474, %v1441
        %v1476 = vpop.permute.xlu0 %1475
        %1479 = vset.pattern.permute.xlu0 0
        %1480 = vperm.xlu0 %1479, %v1442
        %v1481 = vpop.permute.xlu0 %1480
        %v1484 = vsel %vm851, %v1426, 0
        %v1487 = vsel %vm851, %v1427, 0
        %v1490 = vsel %vm851, %v1428, 0
        %v1493 = vsel %vm851, %v1429, 0
        %v1496 = vsel %vm851, %v1430, 0
        %v1499 = vsel %vm851, %v1431, 0
        %v1502 = vsel %vm851, %v1432, 0
        %v1505 = vsel %vm851, %v1433, 0
        %1507 = vmatprep.subr.mxu0 0.0
        %1508 = vmatpush1.msra.mxu0 %v1213
        %1509 = vmatprep.subr.mxu0 0.0
        %1510 = vmatpush1.msra.mxu0 %v1214
        %1511 = vmatprep.subr.mxu0 0.0
        %1512 = vmatpush1.msra.mxu0 %v1423
        %1513 = vmatprep.subr.mxu0 0.0
        %1514 = vmatpush1.msra.mxu0 %v1424
        %1515 = vmatprep.subr.mxu0 0.0
        %1516 = vmatpush1.msra.mxu0 0.0
        %1517 = vmatprep.subr.mxu0 0.0
        %1518 = vmatpush1.msra.mxu0 0.0
        %1519 = vmatprep.subr.mxu0 0.0
        %1520 = vmatpush1.msra.mxu0 0.0
        %1521 = vmatprep.subr.mxu0 0.0
        %1522 = vmatpush1.msra.mxu0 0.0
        %1523 = vmatprep.subr.mxu0 0.0
        %1524 = vmatpush1.msra.mxu0 0.0
        %1525 = vmatprep.subr.mxu0 0.0
        %1526 = vmatpush1.msra.mxu0 0.0
        %1527 = vmatprep.subr.mxu0 0.0
        %1528 = vmatpush1.msra.mxu0 0.0
        %1529 = vmatprep.subr.mxu0 0.0
        %1530 = vmatpush1.msra.mxu0 0.0
        %1531 = vmatprep.subr.mxu0 0.0
        %1532 = vmatpush1.msra.mxu0 0.0
        %1533 = vmatprep.subr.mxu0 0.0
        %1534 = vmatpush1.msra.mxu0 0.0
        %1535 = vmatprep.subr.mxu0 0.0
        %1536 = vmatpush1.msra.mxu0 0.0
        %1537 = vmatprep.subr.mxu0 0.0
        %1538 = vmatpush1.msra.mxu0 0.0
        %1539 = vmatprep.subr.mxu0 0.0
        %1540 = vmatpush1.msra.mxu0 0.0
        %1541 = vmatprep.subr.mxu0 0.0
        %1542 = vmatpush1.msra.mxu0 0.0
        %1543 = vmatprep.subr.mxu0 0.0
        %1544 = vmatpush1.msra.mxu0 0.0
        %1545 = vmatprep.subr.mxu0 0.0
        %1546 = vmatpush1.msra.mxu0 0.0
        %1547 = vmatprep.subr.mxu0 0.0
        %1548 = vmatpush1.msra.mxu0 0.0
        %1549 = vmatprep.subr.mxu0 0.0
        %1550 = vmatpush1.msra.mxu0 0.0
        %1551 = vmatprep.subr.mxu0 0.0
        %1552 = vmatpush1.msra.mxu0 0.0
        %1553 = vmatprep.subr.mxu0 0.0
        %1554 = vmatpush1.msra.mxu0 0.0
        %1555 = vmatprep.subr.mxu0 0.0
        %1556 = vmatpush1.msra.mxu0 0.0
        %1557 = vmatprep.subr.mxu0 0.0
        %1558 = vmatpush1.msra.mxu0 0.0
        %1559 = vmatprep.subr.mxu0 0.0
        %1560 = vmatpush1.msra.mxu0 0.0
        %1561 = vmatprep.subr.mxu0 0.0
        %1562 = vmatpush1.msra.mxu0 0.0
        %1563 = vmatprep.subr.mxu0 0.0
        %1564 = vmatpush1.msra.mxu0 0.0
        %1565 = vmatprep.subr.mxu0 0.0
        %1566 = vmatpush1.msra.mxu0 0.0
        %1567 = vmatprep.subr.mxu0 0.0
        %1568 = vmatpush1.msra.mxu0 0.0
        %1569 = vmatprep.subr.mxu0 0.0
        %1570 = vmatpush1.msra.mxu0 0.0
        %1571 = vmatprep.mubr.f32.mxu0 0.0
        %1572 = vmatmul.mubr.f32.gmra.mrb[0].mxu0 %v1484
        %v1573 = vpop.f32.mrb[0].mxu0
        %v1574 = vadd.f32 %v1446, %v1573
        %v1575 = vpop.f32.mrb[0].mxu0
        %1576 = vmatprep.mubr.f32.mxu0 0.0
        %1577 = vmatmul.mubr.f32.gmra.mrb[0].mxu0 %v1487
        %v1578 = vpop.f32.mrb[0].mxu0
        %v1579 = vadd.f32 %v1451, %v1578
        %v1580 = vpop.f32.mrb[0].mxu0
        %1581 = vmatprep.mubr.f32.mxu0 0.0
        %1582 = vmatmul.mubr.f32.gmra.mrb[0].mxu0 %v1490
        %v1583 = vpop.f32.mrb[0].mxu0
        %v1584 = vadd.f32 %v1456, %v1583
        %v1585 = vpop.f32.mrb[0].mxu0
        %1586 = vmatprep.mubr.f32.mxu0 0.0
        %1587 = vmatmul.mubr.f32.gmra.mrb[0].mxu0 %v1493
        %v1588 = vpop.f32.mrb[0].mxu0
        %v1589 = vadd.f32 %v1461, %v1588
        %v1590 = vpop.f32.mrb[0].mxu0
        %1591 = vmatprep.mubr.f32.mxu0 0.0
        %1592 = vmatmul.mubr.f32.gmra.mrb[0].mxu0 %v1496
        %v1593 = vpop.f32.mrb[0].mxu0
        %v1594 = vadd.f32 %v1466, %v1593
        %v1595 = vpop.f32.mrb[0].mxu0
        %1596 = vmatprep.mubr.f32.mxu0 0.0
        %1597 = vmatmul.mubr.f32.gmra.mrb[0].mxu0 %v1499
        %v1598 = vpop.f32.mrb[0].mxu0
        %v1599 = vadd.f32 %v1471, %v1598
        %v1600 = vpop.f32.mrb[0].mxu0
        %1601 = vmatprep.mubr.f32.mxu0 0.0
        %1602 = vmatmul.mubr.f32.gmra.mrb[0].mxu0 %v1502
        %v1603 = vpop.f32.mrb[0].mxu0
        %v1604 = vadd.f32 %v1476, %v1603
        %v1605 = vpop.f32.mrb[0].mxu0
        %1606 = vmatprep.mubr.f32.mxu0 0.0
        %1607 = vmatmul.mubr.f32.gmra.mrb[0].mxu0 %v1505
        %v1608 = vpop.f32.mrb[0].mxu0
        %v1609 = vadd.f32 %v1481, %v1608
        %v1610 = vpop.f32.mrb[0].mxu0
        %1611 = vdwg.mxu0
        %v1612 = vmul.f32 %v1574, %v1574
        %v1613 = vmul.f32 %v1579, %v1579
        %v1614 = vmul.f32 %v1584, %v1584
        %v1615 = vmul.f32 %v1589, %v1589
        %v1616 = vmul.f32 %v1594, %v1594
        %v1617 = vmul.f32 %v1599, %v1599
        %v1618 = vmul.f32 %v1604, %v1604
        %v1619 = vmul.f32 %v1609, %v1609
        %v1620 = vadd.f32 %v1612, %v1614
        %v1621 = vadd.f32 %v1613, %v1615
        %v1622 = vadd.f32 %v1620, %v1616
        %v1623 = vadd.f32 %v1621, %v1617
        %v1624 = vadd.f32 %v1622, %v1618
        %v1625 = vadd.f32 %v1623, %v1619
        %v1626 = vmul.f32 %v1624, -100.0
        %v1627 = vmul.f32 %v1625, -100.0
        %v1628 = vmul.f32 %v1584, 10.0
        %v1629 = vmul.f32 %v1589, 10.0
        %v1630 = vsub.f32 %v1626, %v1628
        %v1631 = vsub.f32 %v1627, %v1629
        %v1632 = vmul.f32 %v1630, 1.442695
        %v1633 = vpow.pop %v1632
        %v1634 = vmul.f32 %v1631, 1.442695
        %v1635 = vpow.pop %v1634
        %v1636 = vmul.f32 %v1574, 10.0
        %v1637 = vmul.f32 %v1579, 10.0
        %v1638 = vand.u32 2147483647, %v1636
        %vm1639 = vcmp.le.f32.partialorder %v1638, 0.7853982
        %vm1640 = vcmp.lt.s32.totalorder %v1636, 0
        %v1641 = vand.u32 %v1636, 2139095040
        %v1642 = vshrl.u32 %v1641, 23
        %v1643 = vsub.s32 %v1642, 127
        %v1644 = vand.u32 2147483647, %v1636
        %v1645 = vand.u32 %v1644, 8388607
        %v1646 = vor.u32 %v1645, 8388608
        %v1647 = vsub.s32 0, %v1646
        %v1648 = vadd.s32 %v1643, 1
        %vm1649 = vcmp.gt.s32.totalorder %v1648, 0
        %v1650 = vsel %vm1649, %v1648, 0
        %v1651 = vshrl.u32 %v1650, 5
        %v1652 = vand.u32 %v1650, 31
        %v1653 = vsub.s32 32, %v1652
        %v1654 = vshrl.u32 683565275, %v1653
        %v1655 = vshll.u32 683565275, %v1652
        %v1656 = vshrl.u32 2475754826, %v1653
        %v1657 = vor.u32 %v1655, %v1656
        %v1658 = vshll.u32 2475754826, %v1652
        %v1659 = vshrl.u32 2131351028, %v1653
        %v1660 = vor.u32 %v1658, %v1659
        %v1661 = vshll.u32 2131351028, %v1652
        %v1662 = vshrl.u32 2102212464, %v1653
        %v1663 = vor.u32 %v1661, %v1662
        %v1664 = vshll.u32 2102212464, %v1652
        %v1665 = vshrl.u32 920167782, %v1653
        %v1666 = vor.u32 %v1664, %v1665
        %v1667 = vshll.u32 920167782, %v1652
        %v1668 = vshrl.u32 1326507024, %v1653
        %v1669 = vor.u32 %v1667, %v1668
        %vm1670 = vcmp.lt.s32.totalorder %v1651, 1
        %vm1671 = vcmp.lt.s32.totalorder %v1651, 2
        %vm1672 = vcmp.lt.s32.totalorder %v1651, 3
        %vm1673 = vcmp.lt.s32.totalorder %v1651, 4
        %v1674 = vsel %vm1670, %v1654, %v1657
        %v1675 = vsel %vm1673, %v1663, 2102212464
        %v1676 = vsel %vm1672, %v1660, %v1675
        %v1677 = vsel %vm1671, %v1674, %v1676
        %v1678 = vsel %vm1670, %v1657, %v1660
        %v1679 = vsel %vm1673, %v1666, 920167782
        %v1680 = vsel %vm1672, %v1663, %v1679
        %v1681 = vsel %vm1671, %v1678, %v1680
        %v1682 = vsel %vm1670, %v1660, %v1663
        %v1683 = vsel %vm1673, %v1669, 1326507024
        %v1684 = vsel %vm1672, %v1666, %v1683
        %v1685 = vsel %vm1671, %v1682, %v1684
        %v1686 = vshll.u32 %v1646, 8
        %v1687 = vmul.u32.u64.compose %v1686, %v1685
        %v1688 = vextract.low.u32 %v1687
        %v1689 = vextract.high.u32 %v1687
        %v1690 = vmul.u32.u64.compose %v1686, %v1681
        %v1691 = vextract.low.u32 %v1690
        %v1692 = vextract.high.u32 %v1690
        %v1693 = vmul.u32 %v1686, %v1677
        %v1694 = vadd.s32 %v1689, %v1691
        %vm1695 = vc.u32 %v1689, %v1691
        %v1696 = vadd.s32 %v1692, 1
        %v1697 = vsel %vm1695, %v1696, %v1692
        %v1698 = vadd.s32 %v1693, %v1697
        %v1699 = vadd.s32 %v1698, 536870912
        %v1700 = vshrl.u32 %v1699, 30
        %v1701 = vshll.u32 %v1700, 30
        %v1702 = vsub.s32 %v1698, %v1701
        %vm1703 = vcmp.lt.s32.totalorder %v1702, 0
        %v1704 = vsub.s32 0, %v1702
        %v1705 = vsel %vm1703, %v1704, %v1702
        %v1706 = vclz %v1705
        %v1707 = vsub.s32 %v1706, 2
        %vm1708 = vcmp.gt.s32.totalorder 0, %v1707
        %v1709 = vsel %vm1708, 0, %v1707
        %v1710 = vsub.s32 32, %v1709
        %v1711 = vshll.u32 %v1702, %v1709
        %v1712 = vshrl.u32 %v1694, %v1710
        %v1713 = vor.u32 %v1711, %v1712
        %v1714 = vsub.s32 4294967266, %v1709
        %v1715 = vadd.s32 %v1714, 127
        %v1716 = vshll.u32 %v1715, 23
        %v1717 = vor.u32 4788187, %v1716
        %v1718 = vand.u32 2147483647, %v1717
        %v1720 = vcvt.s32.f32 %v1713
        %v1721 = vmul.f32 %v1720, %v1718
        %v1722 = vxor.u32 %v1721, 2147483648
        %v1723 = vsel %vm1640, %v1722, %v1721
        %v1724 = vsub.s32 4, %v1700
        %v1725 = vsel %vm1640, %v1724, %v1700
        %v1726 = vsel %vm1639, %v1636, %v1723
        %v1727 = vsel %vm1639, 0, %v1725
        %v1728 = vcosq.f32.pop %v1726
        %v1729 = vsinq.f32.pop %v1726
        %vm1730 = vweird.f32 %v1636
        %v1731 = vand.u32 %v1727, 3
        %vm1732 = vcmp.lt.s32.totalorder %v1731, 2
        %vm1733 = vcmp.eq.s32.totalorder %v1731, 0
        %v1734 = vxor.u32 %v1729, 2147483648
        %v1735 = vsel %vm1733, %v1728, %v1734
        %vm1736 = vcmp.eq.s32.totalorder %v1731, 2
        %v1737 = vxor.u32 %v1728, 2147483648
        %v1738 = vsel %vm1736, %v1737, %v1729
        %v1739 = vsel %vm1732, %v1735, %v1738
        %v1740 = vsel %vm1730, nan, %v1739
        %v1741 = vand.u32 2147483647, %v1637
        %vm1742 = vcmp.le.f32.partialorder %v1741, 0.7853982
        %vm1743 = vcmp.lt.s32.totalorder %v1637, 0
        %v1744 = vand.u32 %v1637, 2139095040
        %v1745 = vshrl.u32 %v1744, 23
        %v1746 = vsub.s32 %v1745, 127
        %v1747 = vand.u32 2147483647, %v1637
        %v1748 = vand.u32 %v1747, 8388607
        %v1749 = vor.u32 %v1748, 8388608
        %v1750 = vsub.s32 0, %v1749
        %v1751 = vadd.s32 %v1746, 1
        %vm1752 = vcmp.gt.s32.totalorder %v1751, 0
        %v1753 = vsel %vm1752, %v1751, 0
        %v1754 = vshrl.u32 %v1753, 5
        %v1755 = vand.u32 %v1753, 31
        %v1756 = vsub.s32 32, %v1755
        %v1757 = vshrl.u32 683565275, %v1756
        %v1758 = vshll.u32 683565275, %v1755
        %v1759 = vshrl.u32 2475754826, %v1756
        %v1760 = vor.u32 %v1758, %v1759
        %v1761 = vshll.u32 2475754826, %v1755
        %v1762 = vshrl.u32 2131351028, %v1756
        %v1763 = vor.u32 %v1761, %v1762
        %v1764 = vshll.u32 2131351028, %v1755
        %v1765 = vshrl.u32 2102212464, %v1756
        %v1766 = vor.u32 %v1764, %v1765
        %v1767 = vshll.u32 2102212464, %v1755
        %v1768 = vshrl.u32 920167782, %v1756
        %v1769 = vor.u32 %v1767, %v1768
        %v1770 = vshll.u32 920167782, %v1755
        %v1771 = vshrl.u32 1326507024, %v1756
        %v1772 = vor.u32 %v1770, %v1771
        %vm1773 = vcmp.lt.s32.totalorder %v1754, 1
        %vm1774 = vcmp.lt.s32.totalorder %v1754, 2
        %vm1775 = vcmp.lt.s32.totalorder %v1754, 3
        %vm1776 = vcmp.lt.s32.totalorder %v1754, 4
        %v1777 = vsel %vm1773, %v1757, %v1760
        %v1778 = vsel %vm1776, %v1766, 2102212464
        %v1779 = vsel %vm1775, %v1763, %v1778
        %v1780 = vsel %vm1774, %v1777, %v1779
        %v1781 = vsel %vm1773, %v1760, %v1763
        %v1782 = vsel %vm1776, %v1769, 920167782
        %v1783 = vsel %vm1775, %v1766, %v1782
        %v1784 = vsel %vm1774, %v1781, %v1783
        %v1785 = vsel %vm1773, %v1763, %v1766
        %v1786 = vsel %vm1776, %v1772, 1326507024
        %v1787 = vsel %vm1775, %v1769, %v1786
        %v1788 = vsel %vm1774, %v1785, %v1787
        %v1789 = vshll.u32 %v1749, 8
        %v1790 = vmul.u32.u64.compose %v1789, %v1788
        %v1791 = vextract.low.u32 %v1790
        %v1792 = vextract.high.u32 %v1790
        %v1793 = vmul.u32.u64.compose %v1789, %v1784
        %v1794 = vextract.low.u32 %v1793
        %v1795 = vextract.high.u32 %v1793
        %v1796 = vmul.u32 %v1789, %v1780
        %v1797 = vadd.s32 %v1792, %v1794
        %vm1798 = vc.u32 %v1792, %v1794
        %v1799 = vadd.s32 %v1795, 1
        %v1800 = vsel %vm1798, %v1799, %v1795
        %v1801 = vadd.s32 %v1796, %v1800
        %v1802 = vadd.s32 %v1801, 536870912
        %v1803 = vshrl.u32 %v1802, 30
        %v1804 = vshll.u32 %v1803, 30
        %v1805 = vsub.s32 %v1801, %v1804
        %vm1806 = vcmp.lt.s32.totalorder %v1805, 0
        %v1807 = vsub.s32 0, %v1805
        %v1808 = vsel %vm1806, %v1807, %v1805
        %v1809 = vclz %v1808
        %v1810 = vsub.s32 %v1809, 2
        %vm1811 = vcmp.gt.s32.totalorder 0, %v1810
        %v1812 = vsel %vm1811, 0, %v1810
        %v1813 = vsub.s32 32, %v1812
        %v1814 = vshll.u32 %v1805, %v1812
        %v1815 = vshrl.u32 %v1797, %v1813
        %v1816 = vor.u32 %v1814, %v1815
        %v1817 = vsub.s32 4294967266, %v1812
        %v1818 = vadd.s32 %v1817, 127
        %v1819 = vshll.u32 %v1818, 23
        %v1820 = vor.u32 4788187, %v1819
        %v1821 = vand.u32 2147483647, %v1820
        %v1823 = vcvt.s32.f32 %v1816
        %v1824 = vmul.f32 %v1823, %v1821
        %v1825 = vxor.u32 %v1824, 2147483648
        %v1826 = vsel %vm1743, %v1825, %v1824
        %v1827 = vsub.s32 4, %v1803
        %v1828 = vsel %vm1743, %v1827, %v1803
        %v1829 = vsel %vm1742, %v1637, %v1826
        %v1830 = vsel %vm1742, 0, %v1828
        %v1831 = vcosq.f32.pop %v1829
        %v1832 = vsinq.f32.pop %v1829
        %vm1833 = vweird.f32 %v1637
        %v1834 = vand.u32 %v1830, 3
        %vm1835 = vcmp.lt.s32.totalorder %v1834, 2
        %vm1836 = vcmp.eq.s32.totalorder %v1834, 0
        %v1837 = vxor.u32 %v1832, 2147483648
        %v1838 = vsel %vm1836, %v1831, %v1837
        %vm1839 = vcmp.eq.s32.totalorder %v1834, 2
        %v1840 = vxor.u32 %v1831, 2147483648
        %v1841 = vsel %vm1839, %v1840, %v1832
        %v1842 = vsel %vm1835, %v1838, %v1841
        %v1843 = vsel %vm1833, nan, %v1842
        %v1844 = vmul.f32 %v1740, %v1633
        %v1845 = vmul.f32 %v1843, %v1635
        %v1846 = vand.u32 2147483647, %v1636
        %vm1847 = vcmp.le.f32.partialorder %v1846, 0.7853982
        %vm1848 = vcmp.lt.s32.totalorder %v1636, 0
        %v1849 = vand.u32 %v1636, 2139095040
        %v1850 = vshrl.u32 %v1849, 23
        %v1851 = vsub.s32 %v1850, 127
        %v1852 = vand.u32 2147483647, %v1636
        %v1853 = vand.u32 %v1852, 8388607
        %v1854 = vor.u32 %v1853, 8388608
        %v1855 = vsub.s32 0, %v1854
        %v1856 = vadd.s32 %v1851, 1
        %vm1857 = vcmp.gt.s32.totalorder %v1856, 0
        %v1858 = vsel %vm1857, %v1856, 0
        %v1859 = vshrl.u32 %v1858, 5
        %v1860 = vand.u32 %v1858, 31
        %v1861 = vsub.s32 32, %v1860
        %v1862 = vshrl.u32 683565275, %v1861
        %v1863 = vshll.u32 683565275, %v1860
        %v1864 = vshrl.u32 2475754826, %v1861
        %v1865 = vor.u32 %v1863, %v1864
        %v1866 = vshll.u32 2475754826, %v1860
        %v1867 = vshrl.u32 2131351028, %v1861
        %v1868 = vor.u32 %v1866, %v1867
        %v1869 = vshll.u32 2131351028, %v1860
        %v1870 = vshrl.u32 2102212464, %v1861
        %v1871 = vor.u32 %v1869, %v1870
        %v1872 = vshll.u32 2102212464, %v1860
        %v1873 = vshrl.u32 920167782, %v1861
        %v1874 = vor.u32 %v1872, %v1873
        %v1875 = vshll.u32 920167782, %v1860
        %v1876 = vshrl.u32 1326507024, %v1861
        %v1877 = vor.u32 %v1875, %v1876
        %vm1878 = vcmp.lt.s32.totalorder %v1859, 1
        %vm1879 = vcmp.lt.s32.totalorder %v1859, 2
        %vm1880 = vcmp.lt.s32.totalorder %v1859, 3
        %vm1881 = vcmp.lt.s32.totalorder %v1859, 4
        %v1882 = vsel %vm1878, %v1862, %v1865
        %v1883 = vsel %vm1881, %v1871, 2102212464
        %v1884 = vsel %vm1880, %v1868, %v1883
        %v1885 = vsel %vm1879, %v1882, %v1884
        %v1886 = vsel %vm1878, %v1865, %v1868
        %v1887 = vsel %vm1881, %v1874, 920167782
        %v1888 = vsel %vm1880, %v1871, %v1887
        %v1889 = vsel %vm1879, %v1886, %v1888
        %v1890 = vsel %vm1878, %v1868, %v1871
        %v1891 = vsel %vm1881, %v1877, 1326507024
        %v1892 = vsel %vm1880, %v1874, %v1891
        %v1893 = vsel %vm1879, %v1890, %v1892
        %v1894 = vshll.u32 %v1854, 8
        %v1895 = vmul.u32.u64.compose %v1894, %v1893
        %v1896 = vextract.low.u32 %v1895
        %v1897 = vextract.high.u32 %v1895
        %v1898 = vmul.u32.u64.compose %v1894, %v1889
        %v1899 = vextract.low.u32 %v1898
        %v1900 = vextract.high.u32 %v1898
        %v1901 = vmul.u32 %v1894, %v1885
        %v1902 = vadd.s32 %v1897, %v1899
        %vm1903 = vc.u32 %v1897, %v1899
        %v1904 = vadd.s32 %v1900, 1
        %v1905 = vsel %vm1903, %v1904, %v1900
        %v1906 = vadd.s32 %v1901, %v1905
        %v1907 = vadd.s32 %v1906, 536870912
        %v1908 = vshrl.u32 %v1907, 30
        %v1909 = vshll.u32 %v1908, 30
        %v1910 = vsub.s32 %v1906, %v1909
        %vm1911 = vcmp.lt.s32.totalorder %v1910, 0
        %v1912 = vsub.s32 0, %v1910
        %v1913 = vsel %vm1911, %v1912, %v1910
        %v1914 = vclz %v1913
        %v1915 = vsub.s32 %v1914, 2
        %vm1916 = vcmp.gt.s32.totalorder 0, %v1915
        %v1917 = vsel %vm1916, 0, %v1915
        %v1918 = vsub.s32 32, %v1917
        %v1919 = vshll.u32 %v1910, %v1917
        %v1920 = vshrl.u32 %v1902, %v1918
        %v1921 = vor.u32 %v1919, %v1920
        %v1922 = vsub.s32 4294967266, %v1917
        %v1923 = vadd.s32 %v1922, 127
        %v1924 = vshll.u32 %v1923, 23
        %v1925 = vor.u32 4788187, %v1924
        %v1926 = vand.u32 2147483647, %v1925
        %v1928 = vcvt.s32.f32 %v1921
        %v1929 = vmul.f32 %v1928, %v1926
        %v1930 = vxor.u32 %v1929, 2147483648
        %v1931 = vsel %vm1848, %v1930, %v1929
        %v1932 = vsub.s32 4, %v1908
        %v1933 = vsel %vm1848, %v1932, %v1908
        %v1934 = vsel %vm1847, %v1636, %v1931
        %v1935 = vsel %vm1847, 0, %v1933
        %v1936 = vcosq.f32.pop %v1934
        %v1937 = vsinq.f32.pop %v1934
        %vm1938 = vweird.f32 %v1636
        %v1939 = vadd.s32 %v1935, 3
        %v1940 = vand.u32 %v1939, 3
        %vm1941 = vcmp.lt.s32.totalorder %v1940, 2
        %vm1942 = vcmp.eq.s32.totalorder %v1940, 0
        %v1943 = vxor.u32 %v1937, 2147483648
        %v1944 = vsel %vm1942, %v1936, %v1943
        %vm1945 = vcmp.eq.s32.totalorder %v1940, 2
        %v1946 = vxor.u32 %v1936, 2147483648
        %v1947 = vsel %vm1945, %v1946, %v1937
        %v1948 = vsel %vm1941, %v1944, %v1947
        %v1949 = vsel %vm1938, nan, %v1948
        %v1950 = vand.u32 2147483647, %v1637
        %vm1951 = vcmp.le.f32.partialorder %v1950, 0.7853982
        %vm1952 = vcmp.lt.s32.totalorder %v1637, 0
        %v1953 = vand.u32 %v1637, 2139095040
        %v1954 = vshrl.u32 %v1953, 23
        %v1955 = vsub.s32 %v1954, 127
        %v1956 = vand.u32 2147483647, %v1637
        %v1957 = vand.u32 %v1956, 8388607
        %v1958 = vor.u32 %v1957, 8388608
        %v1959 = vsub.s32 0, %v1958
        %v1960 = vadd.s32 %v1955, 1
        %vm1961 = vcmp.gt.s32.totalorder %v1960, 0
        %v1962 = vsel %vm1961, %v1960, 0
        %v1963 = vshrl.u32 %v1962, 5
        %v1964 = vand.u32 %v1962, 31
        %v1965 = vsub.s32 32, %v1964
        %v1966 = vshrl.u32 683565275, %v1965
        %v1967 = vshll.u32 683565275, %v1964
        %v1968 = vshrl.u32 2475754826, %v1965
        %v1969 = vor.u32 %v1967, %v1968
        %v1970 = vshll.u32 2475754826, %v1964
        %v1971 = vshrl.u32 2131351028, %v1965
        %v1972 = vor.u32 %v1970, %v1971
        %v1973 = vshll.u32 2131351028, %v1964
        %v1974 = vshrl.u32 2102212464, %v1965
        %v1975 = vor.u32 %v1973, %v1974
        %v1976 = vshll.u32 2102212464, %v1964
        %v1977 = vshrl.u32 920167782, %v1965
        %v1978 = vor.u32 %v1976, %v1977
        %v1979 = vshll.u32 920167782, %v1964
        %v1980 = vshrl.u32 1326507024, %v1965
        %v1981 = vor.u32 %v1979, %v1980
        %vm1982 = vcmp.lt.s32.totalorder %v1963, 1
        %vm1983 = vcmp.lt.s32.totalorder %v1963, 2
        %vm1984 = vcmp.lt.s32.totalorder %v1963, 3
        %vm1985 = vcmp.lt.s32.totalorder %v1963, 4
        %v1986 = vsel %vm1982, %v1966, %v1969
        %v1987 = vsel %vm1985, %v1975, 2102212464
        %v1988 = vsel %vm1984, %v1972, %v1987
        %v1989 = vsel %vm1983, %v1986, %v1988
        %v1990 = vsel %vm1982, %v1969, %v1972
        %v1991 = vsel %vm1985, %v1978, 920167782
        %v1992 = vsel %vm1984, %v1975, %v1991
        %v1993 = vsel %vm1983, %v1990, %v1992
        %v1994 = vsel %vm1982, %v1972, %v1975
        %v1995 = vsel %vm1985, %v1981, 1326507024
        %v1996 = vsel %vm1984, %v1978, %v1995
        %v1997 = vsel %vm1983, %v1994, %v1996
        %v1998 = vshll.u32 %v1958, 8
        %v1999 = vmul.u32.u64.compose %v1998, %v1997
        %v2000 = vextract.low.u32 %v1999
        %v2001 = vextract.high.u32 %v1999
        %v2002 = vmul.u32.u64.compose %v1998, %v1993
        %v2003 = vextract.low.u32 %v2002
        %v2004 = vextract.high.u32 %v2002
        %v2005 = vmul.u32 %v1998, %v1989
        %v2006 = vadd.s32 %v2001, %v2003
        %vm2007 = vc.u32 %v2001, %v2003
        %v2008 = vadd.s32 %v2004, 1
        %v2009 = vsel %vm2007, %v2008, %v2004
        %v2010 = vadd.s32 %v2005, %v2009
        %v2011 = vadd.s32 %v2010, 536870912
        %v2012 = vshrl.u32 %v2011, 30
        %v2013 = vshll.u32 %v2012, 30
        %v2014 = vsub.s32 %v2010, %v2013
        %vm2015 = vcmp.lt.s32.totalorder %v2014, 0
        %v2016 = vsub.s32 0, %v2014
        %v2017 = vsel %vm2015, %v2016, %v2014
        %v2018 = vclz %v2017
        %v2019 = vsub.s32 %v2018, 2
        %vm2020 = vcmp.gt.s32.totalorder 0, %v2019
        %v2021 = vsel %vm2020, 0, %v2019
        %v2022 = vsub.s32 32, %v2021
        %v2023 = vshll.u32 %v2014, %v2021
        %v2024 = vshrl.u32 %v2006, %v2022
        %v2025 = vor.u32 %v2023, %v2024
        %v2026 = vsub.s32 4294967266, %v2021
        %v2027 = vadd.s32 %v2026, 127
        %v2028 = vshll.u32 %v2027, 23
        %v2029 = vor.u32 4788187, %v2028
        %v2030 = vand.u32 2147483647, %v2029
        %v2032 = vcvt.s32.f32 %v2025
        %v2033 = vmul.f32 %v2032, %v2030
        %v2034 = vxor.u32 %v2033, 2147483648
        %v2035 = vsel %vm1952, %v2034, %v2033
        %v2036 = vsub.s32 4, %v2012
        %v2037 = vsel %vm1952, %v2036, %v2012
        %v2038 = vsel %vm1951, %v1637, %v2035
        %v2039 = vsel %vm1951, 0, %v2037
        %v2040 = vcosq.f32.pop %v2038
        %v2041 = vsinq.f32.pop %v2038
        %vm2042 = vweird.f32 %v1637
        %v2043 = vadd.s32 %v2039, 3
        %v2044 = vand.u32 %v2043, 3
        %vm2045 = vcmp.lt.s32.totalorder %v2044, 2
        %vm2046 = vcmp.eq.s32.totalorder %v2044, 0
        %v2047 = vxor.u32 %v2041, 2147483648
        %v2048 = vsel %vm2046, %v2040, %v2047
        %vm2049 = vcmp.eq.s32.totalorder %v2044, 2
        %v2050 = vxor.u32 %v2040, 2147483648
        %v2051 = vsel %vm2049, %v2050, %v2041
        %v2052 = vsel %vm2045, %v2048, %v2051
        %v2053 = vsel %vm2042, nan, %v2052
        %v2054 = vmul.f32 %v1949, %v1633
        %v2055 = vmul.f32 %v2053, %v1635
        %v2056 = vld [vmem:[%s5] sm:$0xff]
        %v2057 = vld [vmem:[%s6] sm:$0xff]
        %2059 = vset.pattern.permute.xlu0 0
        %2060 = vperm.xlu0 %2059, %v2057
        %v2061 = vpop.permute.xlu0 %2060
        %v2064 = vsel %vm851, %v2056, 0
        %2066 = vmatprep.subr.mxu0 0.0
        %2067 = vmatpush1.msra.mxu0 %v1844
        %2068 = vmatprep.subr.mxu0 0.0
        %2069 = vmatpush1.msra.mxu0 %v1845
        %2070 = vmatprep.subr.mxu0 0.0
        %2071 = vmatpush1.msra.mxu0 %v2054
        %2072 = vmatprep.subr.mxu0 0.0
        %2073 = vmatpush1.msra.mxu0 %v2055
        %2074 = vmatprep.subr.mxu0 0.0
        %2075 = vmatpush1.msra.mxu0 0.0
        %2076 = vmatprep.subr.mxu0 0.0
        %2077 = vmatpush1.msra.mxu0 0.0
        %2078 = vmatprep.subr.mxu0 0.0
        %2079 = vmatpush1.msra.mxu0 0.0
        %2080 = vmatprep.subr.mxu0 0.0
        %2081 = vmatpush1.msra.mxu0 0.0
        %2082 = vmatprep.subr.mxu0 0.0
        %2083 = vmatpush1.msra.mxu0 0.0
        %2084 = vmatprep.subr.mxu0 0.0
        %2085 = vmatpush1.msra.mxu0 0.0
        %2086 = vmatprep.subr.mxu0 0.0
        %2087 = vmatpush1.msra.mxu0 0.0
        %2088 = vmatprep.subr.mxu0 0.0
        %2089 = vmatpush1.msra.mxu0 0.0
        %2090 = vmatprep.subr.mxu0 0.0
        %2091 = vmatpush1.msra.mxu0 0.0
        %2092 = vmatprep.subr.mxu0 0.0
        %2093 = vmatpush1.msra.mxu0 0.0
        %2094 = vmatprep.subr.mxu0 0.0
        %2095 = vmatpush1.msra.mxu0 0.0
        %2096 = vmatprep.subr.mxu0 0.0
        %2097 = vmatpush1.msra.mxu0 0.0
        %2098 = vmatprep.subr.mxu0 0.0
        %2099 = vmatpush1.msra.mxu0 0.0
        %2100 = vmatprep.subr.mxu0 0.0
        %2101 = vmatpush1.msra.mxu0 0.0
        %2102 = vmatprep.subr.mxu0 0.0
        %2103 = vmatpush1.msra.mxu0 0.0
        %2104 = vmatprep.subr.mxu0 0.0
        %2105 = vmatpush1.msra.mxu0 0.0
        %2106 = vmatprep.subr.mxu0 0.0
        %2107 = vmatpush1.msra.mxu0 0.0
        %2108 = vmatprep.subr.mxu0 0.0
        %2109 = vmatpush1.msra.mxu0 0.0
        %2110 = vmatprep.subr.mxu0 0.0
        %2111 = vmatpush1.msra.mxu0 0.0
        %2112 = vmatprep.subr.mxu0 0.0
        %2113 = vmatpush1.msra.mxu0 0.0
        %2114 = vmatprep.subr.mxu0 0.0
        %2115 = vmatpush1.msra.mxu0 0.0
        %2116 = vmatprep.subr.mxu0 0.0
        %2117 = vmatpush1.msra.mxu0 0.0
        %2118 = vmatprep.subr.mxu0 0.0
        %2119 = vmatpush1.msra.mxu0 0.0
        %2120 = vmatprep.subr.mxu0 0.0
        %2121 = vmatpush1.msra.mxu0 0.0
        %2122 = vmatprep.subr.mxu0 0.0
        %2123 = vmatpush1.msra.mxu0 0.0
        %2124 = vmatprep.subr.mxu0 0.0
        %2125 = vmatpush1.msra.mxu0 0.0
        %2126 = vmatprep.subr.mxu0 0.0
        %2127 = vmatpush1.msra.mxu0 0.0
        %2128 = vmatprep.subr.mxu0 0.0
        %2129 = vmatpush1.msra.mxu0 0.0
        %2130 = vmatprep.mubr.f32.mxu0 0.0
        %2131 = vmatmul.mubr.f32.gmra.mrb[0].mxu0 %v2064
        %v2132 = vpop.f32.mrb[0].mxu0
        %v2133 = vadd.f32 %v2061, %v2132
        %v2134 = vpop.f32.mrb[0].mxu0
        %2135 = vdwg.mxu0
        %2136 = vst [vmem:[%s269] sm:$0xff] %v2133
        %s2137 = sand.u32 %s181, 1
        %s2138 = scalar_lea.sflag [#allocation3], %s2137
        %s2139 = sand.u32 %s181, 1
        %s2140 = smul.addr %s2139, 8
        %s2141 = scalar_lea.vmem [#allocation2], %s2140
        // Predicated region
        $region49: #{tpu_custom_call.1} parent=47 // pred_check
          %p2142 = pneg %p191
        $region50: #{tpu_custom_call.1} parent=47 // pred_check_branch
          %2144 = sbr.rel (%p2142) target = $region52
        $region51: #{tpu_custom_call.1} parent=47 // pred_region
          %s2146 = ssub.s32 128, 128
          %2147 = vsyncadd %s2138, %s2146
          %s2148 = smul.addr %s21, 128
          %s2149 = scalar_lea.hbm %s7, %s2148
          %s2151 = sshll.u32 %s2141, 4
          %s2152 = int_to_ptr.vmem [resolvable:$true] %s2151
          %2154 = dma.vmem_to_hbm [thread:$0]  %s2152, 128, %s2149, %s2138
        $region52: #{tpu_custom_call.1} parent=47 // pred_fallthru
          _
      $region48: #{tpu_custom_call.1} parent=5 // pred_fallthru
        _
      %p2155 = scmp.le.s32.totalorder 2, %s16
      // Predicated region
      $region53: #{tpu_custom_call.1} parent=5 // pred_check
        %p2156 = pneg %p2155
      $region54: #{tpu_custom_call.1} parent=5 // pred_check_branch
        %2158 = sbr.rel (%p2156) target = $region56
      $region55: #{tpu_custom_call.1} parent=5 // pred_region
        %s2159 = ssub.s32 %s16, 2
        // Predicated region
        $region57: #{tpu_custom_call.1} parent=55 // pred_check
          %p2160 = pneg %p197
        $region58: #{tpu_custom_call.1} parent=55 // pred_check_branch
          %2162 = sbr.rel (%p2160) target = $region60
        $region59: #{tpu_custom_call.1} parent=55 // pred_region
          %s2163 = sand.u32 %s182, 1
          %s2164 = scalar_lea.sflag [#allocation3], %s2163
          %s2165 = sand.u32 %s182, 1
          %s2166 = smul.addr %s2165, 8
          %s2167 = scalar_lea.vmem [#allocation2], %s2166
          %2168 = dma.done %s2164, 128
        $region60: #{tpu_custom_call.1} parent=55 // pred_fallthru
          _
      $region56: #{tpu_custom_call.1} parent=5 // pred_fallthru
        _
    $region6: #{tpu_custom_call.1} parent=1 // loop_footer
      %s20 = sadd.s32 1, %s16
    $region7: #{tpu_custom_call.1} parent=1 // loop_footer_branch
      %15 = sbr.rel target = $region3
    $region8: #{tpu_custom_call.1} parent=1 // loop_exit
      _
    %2169 = vsyncpa [#allocation3], 1
    %s2170 = scalar_lea.sflag [#allocation3], 1
    %2171 = vsyncpa %s2170, 1

</llo_original>
